<compile_context>
chip_gen: v5e
topology: v5e:2x2
jax: 0.10.0
libtpu: 0.0.40
codegen_flags: <defaults>
</compile_context>

<pallas_src>
import functools

import jax
import jax.numpy as jnp
from jax.experimental import pallas as pl
from jax.experimental.pallas import tpu as pltpu

LEAKY_SLOPE = 0.01  # PyTorch nn.LeakyReLU default negative_slope


def _leaky_relu(x):
    return jnp.where(x > 0, x, LEAKY_SLOPE * x)


def _round_up(x, m):
    return (x + m - 1) // m * m


# --------------------------------------------------------------------------- #
# Kernel 1: item-MLP + residual  ->  combined (B, E) bf16
# grid = (batch_tiles,)
# --------------------------------------------------------------------------- #
def mlp_kernel(user_emb_ref, item_emb_ref, w1_ref, b1_ref, w2_ref, b2_ref,
               comb_ref):
    # (TB, E) bf16 @ (E, H) bf16 -> f32 accumulate on the MXU.
    h = jnp.dot(item_emb_ref[...], w1_ref[...],
                preferred_element_type=jnp.float32) + b1_ref[...]
    h = _leaky_relu(h)                                          # f32 on the VPU
    h = jnp.dot(h.astype(jnp.bfloat16), w2_ref[...],
                preferred_element_type=jnp.float32) + b2_ref[...]
    h = _leaky_relu(h)
    combined = user_emb_ref[...].astype(jnp.float32) + h        # residual add
    comb_ref[...] = combined.astype(jnp.bfloat16)


# --------------------------------------------------------------------------- #
# Kernel 2: output layer  y = sigmoid(combined @ Wo + bo)
# grid = (item_tiles, batch_tiles)  -- items OUTER so each Wo tile is DMA'd once
# --------------------------------------------------------------------------- #
def output_kernel(comb_ref, wo_ref, bo_ref, out_ref):
    # (TB, E) bf16 @ (E, TN) bf16 -> f32, bias add.
    logits = jnp.dot(comb_ref[...], wo_ref[...],
                     preferred_element_type=jnp.float32) + bo_ref[...]
    # sigmoid(x) = 1 / (1 + exp(-x)): exp on the EUP, approx reciprocal on the
    # EUP too -> keeps the VALU free; f32 math, bf16 lane-dense store.
    probs = pl.reciprocal(1.0 + jnp.exp(-logits), approx=True)
    out_ref[...] = probs.astype(out_ref.dtype)


def cdae_forward(user_input, item_input, params, *,
                 tile_b=256, tile_n=8192, out_dtype=jnp.bfloat16):
    """user_input / item_input: int32 (B, 1) index tensors, as in PyTorch."""
    user_emb_tbl = params["user_embedding"]   # (num_users, E)
    item_emb_tbl = params["item_embedding"]   # (num_items, E)
    W1, b1 = params["W1"], params["b1"]       # (E, H),   (1, H)
    W2, b2 = params["W2"], params["b2"]       # (H, E),   (1, E)
    Wo, bo = params["Wo"], params["bo"]       # (E, N),   (1, N)

    E = user_emb_tbl.shape[1]
    H = W1.shape[1]
    N = Wo.shape[1]
    B = user_input.shape[0]

    # --- tiling / padding -------------------------------------------------
    tile_b = max(8, min(tile_b, _round_up(B, 8)))
    tile_b = _round_up(tile_b, 8)
    tile_n = _round_up(min(tile_n, _round_up(N, 128)), 128)     # multiple of 128
    B_pad = _round_up(B, tile_b)
    N_pad = _round_up(N, tile_n)

    # Embedding gather + squeeze(1) is glue — done in plain JAX.
    # TODO(synk): could fold the gather into the kernels via scalar prefetch;
    # skipped because B*E traffic is negligible next to the Wo matmul.
    user_emb = jnp.take(user_emb_tbl, user_input[:, 0], axis=0)  # (B, E)
    item_emb = jnp.take(item_emb_tbl, item_input[:, 0], axis=0)  # (B, E)
    user_emb = user_emb.astype(jnp.bfloat16)
    item_emb = item_emb.astype(jnp.bfloat16)
    if B_pad != B:
        user_emb = jnp.pad(user_emb, ((0, B_pad - B), (0, 0)))
        item_emb = jnp.pad(item_emb, ((0, B_pad - B), (0, 0)))

    # bf16 weights for the MXU (f32 accumulation inside the kernels).
    W1b = W1.astype(jnp.bfloat16)
    W2b = W2.astype(jnp.bfloat16)
    Wob = Wo.astype(jnp.bfloat16)
    bob = bo
    if N_pad != N:
        Wob = jnp.pad(Wob, ((0, 0), (0, N_pad - N)))
        bob = jnp.pad(bob, ((0, 0), (0, N_pad - N)))

    n_bt = B_pad // tile_b
    n_nt = N_pad // tile_n

    # ---- kernel 1: combined = user_emb + MLP(item_emb) --------------------
    mlp_flops = 2 * B_pad * (E * H + H * E)
    mlp_bytes = ((E * H + H * E) * 2 + (H + E) * 4
                 + 2 * B_pad * E * 2 + B_pad * E * 2)
    combined = pl.pallas_call(
        mlp_kernel,
        out_shape=jax.ShapeDtypeStruct((B_pad, E), jnp.bfloat16),
        grid_spec=pltpu.PrefetchScalarGridSpec(
            num_scalar_prefetch=0,
            grid=(n_bt,),
            in_specs=[
                pl.BlockSpec((tile_b, E), lambda i: (i, 0)),   # user_emb
                pl.BlockSpec((tile_b, E), lambda i: (i, 0)),   # item_emb
                pl.BlockSpec((E, H), lambda i: (0, 0)),        # W1 (resident)
                pl.BlockSpec((1, H), lambda i: (0, 0)),        # b1
                pl.BlockSpec((H, E), lambda i: (0, 0)),        # W2 (resident)
                pl.BlockSpec((1, E), lambda i: (0, 0)),        # b2
            ],
            out_specs=pl.BlockSpec((tile_b, E), lambda i: (i, 0)),
        ),
        compiler_params=pltpu.CompilerParams(
            dimension_semantics=("parallel",),
            vmem_limit_bytes=32 * 1024 * 1024,
        ),
        cost_estimate=pl.CostEstimate(
            flops=mlp_flops, transcendentals=0, bytes_accessed=mlp_bytes),
    )(user_emb, item_emb, W1b, b1, W2b, b2)

    # ---- kernel 2: y = sigmoid(combined @ Wo + bo) -------------------------
    out_bytes_per_elem = jnp.dtype(out_dtype).itemsize
    out_flops = 2 * B_pad * E * N_pad
    out_bytes = (E * N_pad * 2                       # Wo read once (items outer)
                 + N_pad * 4                         # bo
                 + n_nt * B_pad * E * 2              # combined re-read per item tile
                 + B_pad * N_pad * out_bytes_per_elem)

    out = pl.pallas_call(
        output_kernel,
        out_shape=jax.ShapeDtypeStruct((B_pad, N_pad), out_dtype),
        grid_spec=pltpu.PrefetchScalarGridSpec(
            num_scalar_prefetch=0,
            # items on the OUTER axis: Wo/bo block index is constant along the
            # inner batch axis, so each Wo tile is DMA'd exactly once.
            grid=(n_nt, n_bt),
            in_specs=[
                pl.BlockSpec((tile_b, E), lambda j, i: (i, 0)),     # combined
                pl.BlockSpec((E, tile_n), lambda j, i: (0, j)),     # Wo
                pl.BlockSpec((1, tile_n), lambda j, i: (0, j)),     # bo
            ],
            out_specs=pl.BlockSpec((tile_b, tile_n), lambda j, i: (i, j)),
        ),
        compiler_params=pltpu.CompilerParams(
            # No cross-step state: both axes can be megacore-parallel.
            dimension_semantics=("parallel", "parallel"),
            vmem_limit_bytes=48 * 1024 * 1024,   # safe on v7x's 64 MiB VMEM too
        ),
        cost_estimate=pl.CostEstimate(
            flops=out_flops,
            transcendentals=2 * B_pad * N_pad,       # exp + approx reciprocal
            bytes_accessed=out_bytes,
        ),
    )(combined, Wob, bob)

    return out[:B, :N]


def init_params(key, num_users, num_items, embedding_dim=128, hidden=1024):
    ks = jax.random.split(key, 8)
    scale = 0.05
    return {
        "user_embedding": jax.random.normal(ks[0], (num_users, embedding_dim), jnp.float32),
        "item_embedding": jax.random.normal(ks[1], (num_items, embedding_dim), jnp.float32),
        "W1": scale * jax.random.normal(ks[2], (embedding_dim, hidden), jnp.float32),
        "b1": scale * jax.random.normal(ks[3], (1, hidden), jnp.float32),
        "W2": scale * jax.random.normal(ks[4], (hidden, embedding_dim), jnp.float32),
        "b2": scale * jax.random.normal(ks[5], (1, embedding_dim), jnp.float32),
        "Wo": scale * jax.random.normal(ks[6], (embedding_dim, num_items), jnp.float32),
        "bo": scale * jax.random.normal(ks[7], (1, num_items), jnp.float32),
    }


def _reference_forward(user_input, item_input, params):
    """Pure-JAX f32 reference matching the PyTorch forward."""
    ue = jnp.take(params["user_embedding"], user_input[:, 0], axis=0)
    ie = jnp.take(params["item_embedding"], item_input[:, 0], axis=0)
    h = _leaky_relu(ie @ params["W1"] + params["b1"])
    h = _leaky_relu(h @ params["W2"] + params["b2"])
    c = ue + h
    return jax.nn.sigmoid(c @ params["Wo"] + params["bo"])


if __name__ == "__main__":
    # Small shapes; chosen so both grid axes of the output kernel have >1 step
    # and both padding paths (batch 200 -> 256, items 500 -> 512) are exercised.
    num_users, num_items = 64, 500
    embedding_dim, hidden = 128, 1024
    batch = 200

    key = jax.random.PRNGKey(0)
    kp, ku, ki = jax.random.split(key, 3)

    params = init_params(kp, num_users, num_items, embedding_dim, hidden)
    user_input = jax.random.randint(ku, (batch, 1), 0, num_users, dtype=jnp.int32)
    item_input = jax.random.randint(ki, (batch, 1), 0, num_items, dtype=jnp.int32)

    fwd = functools.partial(cdae_forward, tile_b=128, tile_n=256)
    out = fwd(user_input, item_input, params)
    out = jax.block_until_ready(out)

    ref = _reference_forward(user_input, item_input, params)
    assert out.shape == (batch, num_items), out.shape
    max_err = float(jnp.max(jnp.abs(out.astype(jnp.float32) - ref)))
    # bf16 matmul inputs + bf16 output with f32 accumulation vs f32 reference.
    assert max_err < 5e-2, f"max abs err {max_err}"

    print("KERNEL_OK")
</pallas_src>

<mosaic_0001>
module attributes {stable_mosaic.version = 11 : i64} {
  func.func @mlp_kernel(%arg0: i32, %arg1: memref<128x128xbf16, #tpu.memory_space<vmem>>, %arg2: memref<128x128xbf16, #tpu.memory_space<vmem>>, %arg3: memref<128x1024xbf16, #tpu.memory_space<vmem>>, %arg4: memref<1x1024xf32, #tpu.memory_space<vmem>>, %arg5: memref<1024x128xbf16, #tpu.memory_space<vmem>>, %arg6: memref<1x128xf32, #tpu.memory_space<vmem>>, %arg7: memref<128x128xbf16, #tpu.memory_space<vmem>>) attributes {dimension_semantics = [#tpu.dimension_semantics<parallel>], iteration_bounds = array<i64: 2>, scalar_prefetch = 0 : i64, scratch_operands = 0 : i64, tpu.core_type = #tpu.core_type<tc>, window_params = [{transform_indices = @transform_0, window_bounds = array<i64: 128, 128>}, {transform_indices = @transform_1, window_bounds = array<i64: 128, 128>}, {pipeline_mode = #tpu.pipeline_mode<synchronous>, transform_indices = @transform_2, window_bounds = array<i64: 128, 1024>}, {pipeline_mode = #tpu.pipeline_mode<synchronous>, transform_indices = @transform_3, window_bounds = array<i64: 1, 1024>}, {pipeline_mode = #tpu.pipeline_mode<synchronous>, transform_indices = @transform_4, window_bounds = array<i64: 1024, 128>}, {pipeline_mode = #tpu.pipeline_mode<synchronous>, transform_indices = @transform_5, window_bounds = array<i64: 1, 128>}, {transform_indices = @transform_6, window_bounds = array<i64: 128, 128>}]} {
    %c0 = arith.constant 0 : index
    %c0_0 = arith.constant 0 : index
    %0 = vector.load %arg2[%c0, %c0_0] : memref<128x128xbf16, #tpu.memory_space<vmem>>, vector<128x128xbf16>
    %c0_1 = arith.constant 0 : index
    %c0_2 = arith.constant 0 : index
    %1 = vector.load %arg3[%c0_1, %c0_2] : memref<128x1024xbf16, #tpu.memory_space<vmem>>, vector<128x1024xbf16>
    %cst = arith.constant dense<0.000000e+00> : vector<128x1024xf32>
    %2 = tpu.matmul %0, %1, %cst {dimension_numbers = #tpu.dot_dimension_numbers<[1], [0], [0], [1], [0, 0, 1, 1], [], []>} : vector<128x128xbf16>, vector<128x1024xbf16>, vector<128x1024xf32> -> vector<128x1024xf32>
    %c0_3 = arith.constant 0 : index
    %c0_4 = arith.constant 0 : index
    %3 = vector.load %arg4[%c0_3, %c0_4] : memref<1x1024xf32, #tpu.memory_space<vmem>>, vector<1x1024xf32>
    %4 = vector.broadcast %3 : vector<1x1024xf32> to vector<128x1024xf32>
    %5 = arith.addf %2, %4 : vector<128x1024xf32>
    %cst_5 = arith.constant 0.000000e+00 : f32
    %6 = vector.broadcast %cst_5 : f32 to vector<128x1024xf32>
    %7 = arith.cmpf ogt, %5, %6 : vector<128x1024xf32>
    %cst_6 = arith.constant 0.00999999977 : f32
    %8 = vector.broadcast %cst_6 : f32 to vector<128x1024xf32>
    %9 = arith.mulf %8, %5 : vector<128x1024xf32>
    %10 = arith.select %7, %5, %9 : vector<128x1024xi1>, vector<128x1024xf32>
    %11 = arith.truncf %10 : vector<128x1024xf32> to vector<128x1024xbf16>
    %c0_7 = arith.constant 0 : index
    %c0_8 = arith.constant 0 : index
    %12 = vector.load %arg5[%c0_7, %c0_8] : memref<1024x128xbf16, #tpu.memory_space<vmem>>, vector<1024x128xbf16>
    %cst_9 = arith.constant dense<0.000000e+00> : vector<128x128xf32>
    %13 = tpu.matmul %11, %12, %cst_9 {dimension_numbers = #tpu.dot_dimension_numbers<[1], [0], [0], [1], [0, 0, 1, 1], [], []>} : vector<128x1024xbf16>, vector<1024x128xbf16>, vector<128x128xf32> -> vector<128x128xf32>
    %c0_10 = arith.constant 0 : index
    %c0_11 = arith.constant 0 : index
    %14 = vector.load %arg6[%c0_10, %c0_11] : memref<1x128xf32, #tpu.memory_space<vmem>>, vector<1x128xf32>
    %15 = vector.broadcast %14 : vector<1x128xf32> to vector<128x128xf32>
    %16 = arith.addf %13, %15 : vector<128x128xf32>
    %cst_12 = arith.constant 0.000000e+00 : f32
    %17 = vector.broadcast %cst_12 : f32 to vector<128x128xf32>
    %18 = arith.cmpf ogt, %16, %17 : vector<128x128xf32>
    %cst_13 = arith.constant 0.00999999977 : f32
    %19 = vector.broadcast %cst_13 : f32 to vector<128x128xf32>
    %20 = arith.mulf %19, %16 : vector<128x128xf32>
    %21 = arith.select %18, %16, %20 : vector<128x128xi1>, vector<128x128xf32>
    %c0_14 = arith.constant 0 : index
    %c0_15 = arith.constant 0 : index
    %22 = vector.load %arg1[%c0_14, %c0_15] : memref<128x128xbf16, #tpu.memory_space<vmem>>, vector<128x128xbf16>
    %23 = arith.extf %22 : vector<128x128xbf16> to vector<128x128xf32>
    %24 = arith.addf %23, %21 : vector<128x128xf32>
    %25 = arith.truncf %24 : vector<128x128xf32> to vector<128x128xbf16>
    %c0_16 = arith.constant 0 : index
    %c0_17 = arith.constant 0 : index
    %26 = vector.load %arg7[%c0_16, %c0_17] : memref<128x128xbf16, #tpu.memory_space<vmem>>, vector<128x128xbf16>
    tpu.vector_store %arg7[%c0_16, %c0_17], %25 {strides = array<i32>} : memref<128x128xbf16, #tpu.memory_space<vmem>>, vector<128x128xbf16>,
    return
  }
  func.func @transform_0(%arg0: i32) -> (i32, i32) {
    %c0_i32 = arith.constant 0 : i32
    %c0_i32_0 = arith.constant 0 : i32
    return %arg0, %c0_i32 : i32, i32
  }
  func.func @transform_1(%arg0: i32) -> (i32, i32) {
    %c0_i32 = arith.constant 0 : i32
    %c0_i32_0 = arith.constant 0 : i32
    return %arg0, %c0_i32 : i32, i32
  }
  func.func @transform_2(%arg0: i32) -> (i32, i32) {
    %c0_i32 = arith.constant 0 : i32
    %c0_i32_0 = arith.constant 0 : i32
    %c0_i32_1 = arith.constant 0 : i32
    return %c0_i32, %c0_i32_0 : i32, i32
  }
  func.func @transform_3(%arg0: i32) -> (i32, i32) {
    %c0_i32 = arith.constant 0 : i32
    %c0_i32_0 = arith.constant 0 : i32
    %c0_i32_1 = arith.constant 0 : i32
    return %c0_i32, %c0_i32_0 : i32, i32
  }
  func.func @transform_4(%arg0: i32) -> (i32, i32) {
    %c0_i32 = arith.constant 0 : i32
    %c0_i32_0 = arith.constant 0 : i32
    %c0_i32_1 = arith.constant 0 : i32
    return %c0_i32, %c0_i32_0 : i32, i32
  }
  func.func @transform_5(%arg0: i32) -> (i32, i32) {
    %c0_i32 = arith.constant 0 : i32
    %c0_i32_0 = arith.constant 0 : i32
    %c0_i32_1 = arith.constant 0 : i32
    return %c0_i32, %c0_i32_0 : i32, i32
  }
  func.func @transform_6(%arg0: i32) -> (i32, i32) {
    %c0_i32 = arith.constant 0 : i32
    %c0_i32_0 = arith.constant 0 : i32
    return %arg0, %c0_i32 : i32, i32
  }
}

</mosaic_0001>

<llo_original>
// kernel: tpu_custom_call.1
$region0: #{tpu_custom_call.1}
  #allocation0 [shape = 'u32[]', space=smem, size = 0x4, offset = 0x4, fixed_abs, tag = 'smem constant byte address 0x4 - core index']
  #allocation1 [shape = 'u32[72,128]{1,0:T(1,128)}', space=vmem, size = 0x9000, scoped, tag = 'internal scratch']
  %s0 = inlined_call_operand.hbm [shape: bf16[256,128], index: 0, kind: input, shape index: {}]
  %s1 = inlined_call_operand.hbm [shape: bf16[256,128], index: 1, kind: input, shape index: {}]
  %s2 = inlined_call_operand.hbm [shape: bf16[128,1024], index: 2, kind: input, shape index: {}]
  %s3 = inlined_call_operand.hbm [shape: f32[1,1024], index: 3, kind: input, shape index: {}]
  %s4 = inlined_call_operand.hbm [shape: bf16[1024,128], index: 4, kind: input, shape index: {}]
  %s5 = inlined_call_operand.vmem [shape: f32[1,128], index: 5, kind: input, shape index: {}]
  %s6 = inlined_call_operand.hbm [shape: bf16[256,128], index: 6, kind: output, shape index: {}]
  %s7 = sld [smem:[#allocation0]]
  $region77: #{tpu_custom_call.1} parent=0
    _
  %s9 = ssub.s32 1, %s7
  %s10 = scalar_select 0, %s9, %s7
  $region1: #{tpu_custom_call.1} parent=0
    #allocation2 [shape = 'u8[65536]{0}', space=vmem, size = 0x10000, scoped, tag = 'input window, operand 0']
    #allocation3 [shape = 's32[2]{0}', space=sflag, size = 0x8, scoped, tag = 'scoped memory for tpu_custom_call.1']
    #allocation4 [shape = 's32[2]{0}', space=sflag, size = 0x8, scoped, tag = 'scoped memory for tpu_custom_call.1']
    #allocation5 [shape = 'u8[65536]{0}', space=vmem, size = 0x10000, scoped, tag = 'input window, operand 1']
    #allocation6 [shape = 's32[2]{0}', space=sflag, size = 0x8, scoped, tag = 'scoped memory for tpu_custom_call.1']
    #allocation7 [shape = 'u8[262144]{0}', space=vmem, size = 0x40000, scoped, tag = 'input window, operand 2, single buffered']
    #allocation8 [shape = 'u8[4096]{0}', space=vmem, size = 0x1000, scoped, tag = 'input window, operand 3, single buffered']
    #allocation9 [shape = 's32[1]{0}', space=sflag, size = 0x4, scoped, tag = 'scoped memory for tpu_custom_call.1']
    #allocation10 [shape = 'u8[262144]{0}', space=vmem, size = 0x40000, scoped, tag = 'input window, operand 4, single buffered']
    #allocation11 [shape = 'u8[65536]{0}', space=vmem, size = 0x10000, scoped, tag = 'output window, operand 0']
    %11 = vsyncpa [#allocation3], 0
    %s12 = scalar_lea.sflag [#allocation3], 1
    %13 = vsyncpa %s12, 0
    %14 = vsyncpa [#allocation6], 0
    %s15 = scalar_lea.sflag [#allocation6], 1
    %16 = vsyncpa %s15, 0
    %17 = vsyncpa [#allocation9], 0
    %18 = vsyncpa [#allocation4], 0
    %s19 = scalar_lea.sflag [#allocation4], 1
    %20 = vsyncpa %s19, 0
    loop: start=0, step=1, limit=4
    $region2: #{tpu_custom_call.1} parent=1 // loop_pre_header
      _
    $region3: #{tpu_custom_call.1} parent=1 // loop_header
      %s22 = sphi 0, %s26
      %p23 = scmp.ge.s32.totalorder %s22, 4
      %s32 = sphi 0, %s34
      %s35 = sphi 0, %s32
      %s36 = sphi 0, %s35
      %s52 = sphi 0, %s36
      %s58 = sphi 0, %s60
      %s61 = sphi 0, %s58
      %s62 = sphi 0, %s61
      %s78 = sphi 0, %s62
      %s82 = sphi 0, %s82
      %s84 = sphi 0, %s82
      %s85 = sphi 0, %s84
      %s99 = sphi 0, %s85
      %s103 = sphi 0, %s103
      %s105 = sphi 0, %s103
      %s106 = sphi 0, %s105
      %s120 = sphi 0, %s106
      %s124 = sphi 0, %s124
      %s126 = sphi 0, %s124
      %s127 = sphi 0, %s126
      %s141 = sphi 0, %s127
      %s145 = sphi 0, %s145
      %s147 = sphi 0, %s145
      %s148 = sphi 0, %s147
      %s162 = sphi 0, %s148
      %s168 = sphi 0, %s170
      %s171 = sphi 0, %s168
      %s172 = sphi 0, %s171
      %s188 = sphi 0, %s172
    $region4: #{tpu_custom_call.1} parent=1 // loop_header_branch
      %25 = sbr.rel (%p23) target = $region8
    $region5: #{tpu_custom_call.1} parent=1 // loop_body
      %s27 = ssub.s32 %s22, 1
      %s28 = ssub.s32 %s22, 2
      %s29 = sadd.s32 %s22, 1
      %s30 = ssub.s32 %s22, %s29
      %p31 = scmp.eq.s32.totalorder %s30, 0
      %s33 = sadd.s32 %s32, 1
      %s34 = scalar_select %p31, %s32, %s33
      %p37 = pneg %p31
      %p38 = scmp.eq.s32.totalorder %s22, 1
      %p39 = por %p37, %p38
      %p40 = scmp.ne.s32.totalorder %s32, %s35
      %p41 = scmp.eq.s32.totalorder %s22, 0
      %p42 = por %p40, %p41
      %p43 = scmp.ne.s32.totalorder %s32, %s35
      %p44 = scmp.eq.s32.totalorder %s27, 1
      %p45 = por %p43, %p44
      %p46 = scmp.ne.s32.totalorder %s35, %s36
      %p47 = scmp.eq.s32.totalorder %s27, 0
      %p48 = por %p46, %p47
      %p49 = scmp.ne.s32.totalorder %s35, %s36
      %p50 = scmp.eq.s32.totalorder %s28, 1
      %p51 = por %p49, %p50
      %p53 = scmp.ne.s32.totalorder %s36, %s52
      %p54 = scmp.eq.s32.totalorder %s28, 0
      %p55 = por %p53, %p54
      %s56 = ssub.s32 %s22, %s29
      %p57 = scmp.eq.s32.totalorder %s56, 0
      %s59 = sadd.s32 %s58, 1
      %s60 = scalar_select %p57, %s58, %s59
      %p63 = pneg %p57
      %p64 = scmp.eq.s32.totalorder %s22, 1
      %p65 = por %p63, %p64
      %p66 = scmp.ne.s32.totalorder %s58, %s61
      %p67 = scmp.eq.s32.totalorder %s22, 0
      %p68 = por %p66, %p67
      %p69 = scmp.ne.s32.totalorder %s58, %s61
      %p70 = scmp.eq.s32.totalorder %s27, 1
      %p71 = por %p69, %p70
      %p72 = scmp.ne.s32.totalorder %s61, %s62
      %p73 = scmp.eq.s32.totalorder %s27, 0
      %p74 = por %p72, %p73
      %p75 = scmp.ne.s32.totalorder %s61, %s62
      %p76 = scmp.eq.s32.totalorder %s28, 1
      %p77 = por %p75, %p76
      %p79 = scmp.ne.s32.totalorder %s62, %s78
      %p80 = scmp.eq.s32.totalorder %s28, 0
      %p81 = por %p79, %p80
      %s83 = sadd.s32 %s82, 1
      %p86 = scmp.eq.s32.totalorder %s22, 1
      %p87 = scmp.ne.s32.totalorder %s82, %s84
      %p88 = scmp.eq.s32.totalorder %s22, 0
      %p89 = por %p87, %p88
      %p90 = scmp.ne.s32.totalorder %s82, %s84
      %p91 = scmp.eq.s32.totalorder %s27, 1
      %p92 = por %p90, %p91
      %p93 = scmp.ne.s32.totalorder %s84, %s85
      %p94 = scmp.eq.s32.totalorder %s27, 0
      %p95 = por %p93, %p94
      %p96 = scmp.ne.s32.totalorder %s84, %s85
      %p97 = scmp.eq.s32.totalorder %s28, 1
      %p98 = por %p96, %p97
      %p100 = scmp.ne.s32.totalorder %s85, %s99
      %p101 = scmp.eq.s32.totalorder %s28, 0
      %p102 = por %p100, %p101
      %s104 = sadd.s32 %s103, 1
      %p107 = scmp.eq.s32.totalorder %s22, 1
      %p108 = scmp.ne.s32.totalorder %s103, %s105
      %p109 = scmp.eq.s32.totalorder %s22, 0
      %p110 = por %p108, %p109
      %p111 = scmp.ne.s32.totalorder %s103, %s105
      %p112 = scmp.eq.s32.totalorder %s27, 1
      %p113 = por %p111, %p112
      %p114 = scmp.ne.s32.totalorder %s105, %s106
      %p115 = scmp.eq.s32.totalorder %s27, 0
      %p116 = por %p114, %p115
      %p117 = scmp.ne.s32.totalorder %s105, %s106
      %p118 = scmp.eq.s32.totalorder %s28, 1
      %p119 = por %p117, %p118
      %p121 = scmp.ne.s32.totalorder %s106, %s120
      %p122 = scmp.eq.s32.totalorder %s28, 0
      %p123 = por %p121, %p122
      %s125 = sadd.s32 %s124, 1
      %p128 = scmp.eq.s32.totalorder %s22, 1
      %p129 = scmp.ne.s32.totalorder %s124, %s126
      %p130 = scmp.eq.s32.totalorder %s22, 0
      %p131 = por %p129, %p130
      %p132 = scmp.ne.s32.totalorder %s124, %s126
      %p133 = scmp.eq.s32.totalorder %s27, 1
      %p134 = por %p132, %p133
      %p135 = scmp.ne.s32.totalorder %s126, %s127
      %p136 = scmp.eq.s32.totalorder %s27, 0
      %p137 = por %p135, %p136
      %p138 = scmp.ne.s32.totalorder %s126, %s127
      %p139 = scmp.eq.s32.totalorder %s28, 1
      %p140 = por %p138, %p139
      %p142 = scmp.ne.s32.totalorder %s127, %s141
      %p143 = scmp.eq.s32.totalorder %s28, 0
      %p144 = por %p142, %p143
      %s146 = sadd.s32 %s145, 1
      %p149 = scmp.eq.s32.totalorder %s22, 1
      %p150 = scmp.ne.s32.totalorder %s145, %s147
      %p151 = scmp.eq.s32.totalorder %s22, 0
      %p152 = por %p150, %p151
      %p153 = scmp.ne.s32.totalorder %s145, %s147
      %p154 = scmp.eq.s32.totalorder %s27, 1
      %p155 = por %p153, %p154
      %p156 = scmp.ne.s32.totalorder %s147, %s148
      %p157 = scmp.eq.s32.totalorder %s27, 0
      %p158 = por %p156, %p157
      %p159 = scmp.ne.s32.totalorder %s147, %s148
      %p160 = scmp.eq.s32.totalorder %s28, 1
      %p161 = por %p159, %p160
      %p163 = scmp.ne.s32.totalorder %s148, %s162
      %p164 = scmp.eq.s32.totalorder %s28, 0
      %p165 = por %p163, %p164
      %s166 = ssub.s32 %s22, %s29
      %p167 = scmp.eq.s32.totalorder %s166, 0
      %s169 = sadd.s32 %s168, 1
      %s170 = scalar_select %p167, %s168, %s169
      %p173 = pneg %p167
      %p174 = scmp.eq.s32.totalorder %s22, 1
      %p175 = por %p173, %p174
      %p176 = scmp.ne.s32.totalorder %s168, %s171
      %p177 = scmp.eq.s32.totalorder %s22, 0
      %p178 = por %p176, %p177
      %p179 = scmp.ne.s32.totalorder %s168, %s171
      %p180 = scmp.eq.s32.totalorder %s27, 1
      %p181 = por %p179, %p180
      %p182 = scmp.ne.s32.totalorder %s171, %s172
      %p183 = scmp.eq.s32.totalorder %s27, 0
      %p184 = por %p182, %p183
      %p185 = scmp.ne.s32.totalorder %s171, %s172
      %p186 = scmp.eq.s32.totalorder %s28, 1
      %p187 = por %p185, %p186
      %p189 = scmp.ne.s32.totalorder %s172, %s188
      %p190 = scmp.eq.s32.totalorder %s28, 0
      %p191 = por %p189, %p190
      %p192 = scmp.le.s32.totalorder 1, %s22
      %p193 = scmp.lt.s32.totalorder %s22, 3
      %p194 = pnand %p192, %p193
      %p195 = pneg %p194
      // Predicated region
      $region9: #{tpu_custom_call.1} parent=5 // pred_check
        _
      $region10: #{tpu_custom_call.1} parent=5 // pred_check_branch
        %197 = sbr.rel (%p194) target = $region12
      $region11: #{tpu_custom_call.1} parent=5 // pred_region
        %s198 = ssub.s32 %s22, 1
        // Predicated region
        $region13: #{tpu_custom_call.1} parent=11 // pred_check
          %p199 = pneg %p95
        $region14: #{tpu_custom_call.1} parent=11 // pred_check_branch
          %201 = sbr.rel (%p199) target = $region16
        $region15: #{tpu_custom_call.1} parent=11 // pred_region
          %203 = vsyncadd [#allocation6], 0
          %s204 = sshll.u32 %s2, 4
          %s205 = int_to_ptr.hbm [resolvable:$true] %s204
          %s206 = sshll.u32 [#allocation7], 4
          %s207 = int_to_ptr.vmem [resolvable:$true] %s206
          %212 = dma.hbm_to_vmem [thread:$0]  %s205, 8192, %s207, [#allocation6], 512, 512, 32
        $region16: #{tpu_custom_call.1} parent=11 // pred_fallthru
          _
        // Predicated region
        $region17: #{tpu_custom_call.1} parent=11 // pred_check
          %p213 = pneg %p116
        $region18: #{tpu_custom_call.1} parent=11 // pred_check_branch
          %215 = sbr.rel (%p213) target = $region20
        $region19: #{tpu_custom_call.1} parent=11 // pred_region
          %217 = vsyncadd [#allocation9], 0
          %s219 = sshll.u32 %s3, 4
          %s220 = int_to_ptr.hbm [resolvable:$true] %s219
          %s221 = sshll.u32 [#allocation8], 4
          %s222 = int_to_ptr.vmem [resolvable:$true] %s221
          %224 = dma.hbm_to_vmem [thread:$0]  %s220, 128, %s222, [#allocation9]
        $region20: #{tpu_custom_call.1} parent=11 // pred_fallthru
          _
        // Predicated region
        $region21: #{tpu_custom_call.1} parent=11 // pred_check
          %p225 = pneg %p137
        $region22: #{tpu_custom_call.1} parent=11 // pred_check_branch
          %227 = sbr.rel (%p225) target = $region24
        $region23: #{tpu_custom_call.1} parent=11 // pred_region
          %229 = vsyncadd [#allocation9], 0
          %s230 = sshll.u32 %s4, 4
          %s231 = int_to_ptr.hbm [resolvable:$true] %s230
          %s232 = sshll.u32 [#allocation10], 4
          %s233 = int_to_ptr.vmem [resolvable:$true] %s232
          %238 = dma.hbm_to_vmem [thread:$0]  %s231, 8192, %s233, [#allocation9], 64, 64, 4
        $region24: #{tpu_custom_call.1} parent=11 // pred_fallthru
          _
        // Predicated region
        $region25: #{tpu_custom_call.1} parent=11 // pred_check
          %p239 = pneg %p158
        $region26: #{tpu_custom_call.1} parent=11 // pred_check_branch
          %241 = sbr.rel (%p239) target = $region28
        $region27: #{tpu_custom_call.1} parent=11 // pred_region
          _
        $region28: #{tpu_custom_call.1} parent=11 // pred_fallthru
          _
      $region12: #{tpu_custom_call.1} parent=5 // pred_fallthru
        _
      %p242 = scmp.lt.s32.totalorder %s22, 2
      // Predicated region
      $region29: #{tpu_custom_call.1} parent=5 // pred_check
        %p243 = pneg %p242
      $region30: #{tpu_custom_call.1} parent=5 // pred_check_branch
        %245 = sbr.rel (%p243) target = $region32
      $region31: #{tpu_custom_call.1} parent=5 // pred_region
        // Predicated region
        $region33: #{tpu_custom_call.1} parent=31 // pred_check
          %p246 = pneg %p42
        $region34: #{tpu_custom_call.1} parent=31 // pred_check_branch
          %248 = sbr.rel (%p246) target = $region36
        $region35: #{tpu_custom_call.1} parent=31 // pred_region
          %s249 = sand.u32 %s32, 1
          %s250 = scalar_lea.sflag [#allocation3], %s249
          %s251 = sand.u32 %s32, 1
          %s252 = smul.addr %s251, 64
          %s253 = scalar_lea.vmem [#allocation2], %s252
          %s254 = smul.u32 16, %s22
          %256 = vsyncadd %s250, 0
          %s257 = smul.addr %s254, 4
          %s258 = scalar_lea.hbm %s0, %s257
          %s259 = sshll.u32 %s258, 4
          %s260 = int_to_ptr.hbm [resolvable:$true] %s259
          %s261 = sshll.u32 %s253, 4
          %s262 = int_to_ptr.vmem [resolvable:$true] %s261
          %267 = dma.hbm_to_vmem [thread:$0]  %s260, 1024, %s262, %s250, 64, 64, 4
        $region36: #{tpu_custom_call.1} parent=31 // pred_fallthru
          _
        // Predicated region
        $region37: #{tpu_custom_call.1} parent=31 // pred_check
          %p268 = pneg %p68
        $region38: #{tpu_custom_call.1} parent=31 // pred_check_branch
          %270 = sbr.rel (%p268) target = $region40
        $region39: #{tpu_custom_call.1} parent=31 // pred_region
          %s271 = sand.u32 %s22, 1
          %s272 = scalar_lea.sflag [#allocation6], %s271
          %s273 = sand.u32 %s58, 1
          %s274 = smul.addr %s273, 64
          %s275 = scalar_lea.vmem [#allocation5], %s274
          %s276 = smul.u32 16, %s22
          %278 = vsyncadd %s272, 0
          %s279 = smul.addr %s276, 4
          %s280 = scalar_lea.hbm %s1, %s279
          %s281 = sshll.u32 %s280, 4
          %s282 = int_to_ptr.hbm [resolvable:$true] %s281
          %s283 = sshll.u32 %s275, 4
          %s284 = int_to_ptr.vmem [resolvable:$true] %s283
          %289 = dma.hbm_to_vmem [thread:$0]  %s282, 1024, %s284, %s272, 64, 64, 4
        $region40: #{tpu_custom_call.1} parent=31 // pred_fallthru
          _
      $region32: #{tpu_custom_call.1} parent=5 // pred_fallthru
        _
      %p290 = scmp.le.s32.totalorder 1, %s22
      %p291 = scmp.lt.s32.totalorder %s22, 3
      %p292 = pnand %p290, %p291
      %p293 = pneg %p292
      // Predicated region
      $region41: #{tpu_custom_call.1} parent=5 // pred_check
        _
      $region42: #{tpu_custom_call.1} parent=5 // pred_check_branch
        %295 = sbr.rel (%p292) target = $region44
      $region43: #{tpu_custom_call.1} parent=5 // pred_region
        %s296 = ssub.s32 %s22, 1
        %s297 = sand.u32 %s35, 1
        %s298 = scalar_lea.sflag [#allocation3], %s297
        %s299 = sand.u32 %s35, 1
        %s300 = smul.addr %s299, 64
        %s301 = scalar_lea.vmem [#allocation2], %s300
        // Predicated region
        $region45: #{tpu_custom_call.1} parent=43 // pred_check
          %p302 = pneg %p48
        $region46: #{tpu_custom_call.1} parent=43 // pred_check_branch
          %304 = sbr.rel (%p302) target = $region48
        $region47: #{tpu_custom_call.1} parent=43 // pred_region
          %306 = dma.done %s298, 1024
        $region48: #{tpu_custom_call.1} parent=43 // pred_fallthru
          _
        %s307 = sand.u32 %s27, 1
        %s308 = scalar_lea.sflag [#allocation6], %s307
        %s309 = sand.u32 %s61, 1
        %s310 = smul.addr %s309, 64
        %s311 = scalar_lea.vmem [#allocation5], %s310
        // Predicated region
        $region49: #{tpu_custom_call.1} parent=43 // pred_check
          %p312 = pneg %p74
        $region50: #{tpu_custom_call.1} parent=43 // pred_check_branch
          %314 = sbr.rel (%p312) target = $region52
        $region51: #{tpu_custom_call.1} parent=43 // pred_region
          %316 = dma.done %s308, 1024
        $region52: #{tpu_custom_call.1} parent=43 // pred_fallthru
          _
        // Predicated region
        $region53: #{tpu_custom_call.1} parent=43 // pred_check
          %p317 = pneg %p95
        $region54: #{tpu_custom_call.1} parent=43 // pred_check_branch
          %319 = sbr.rel (%p317) target = $region56
        $region55: #{tpu_custom_call.1} parent=43 // pred_region
          %321 = dma.done [#allocation6], 8192
        $region56: #{tpu_custom_call.1} parent=43 // pred_fallthru
          _
        // Predicated region
        $region57: #{tpu_custom_call.1} parent=43 // pred_check
          %p322 = pneg %p116
        $region58: #{tpu_custom_call.1} parent=43 // pred_check_branch
          %324 = sbr.rel (%p322) target = $region60
        $region59: #{tpu_custom_call.1} parent=43 // pred_region
          %326 = dma.done [#allocation9], 128
        $region60: #{tpu_custom_call.1} parent=43 // pred_fallthru
          _
        // Predicated region
        $region61: #{tpu_custom_call.1} parent=43 // pred_check
          %p327 = pneg %p137
        $region62: #{tpu_custom_call.1} parent=43 // pred_check_branch
          %329 = sbr.rel (%p327) target = $region64
        $region63: #{tpu_custom_call.1} parent=43 // pred_region
          %331 = dma.done [#allocation9], 8192
        $region64: #{tpu_custom_call.1} parent=43 // pred_fallthru
          _
        %s332 = sand.u32 %s35, 1
        %s333 = scalar_lea.sflag [#allocation3], %s332
        %s334 = sand.u32 %s35, 1
        %s335 = smul.addr %s334, 64
        %s336 = scalar_lea.vmem [#allocation2], %s335
        %p337 = pneg %p48
        %p338 = pneg %p45
        %s339 = sand.u32 %s27, 1
        %s340 = scalar_lea.sflag [#allocation6], %s339
        %s341 = sand.u32 %s61, 1
        %s342 = smul.addr %s341, 64
        %s343 = scalar_lea.vmem [#allocation5], %s342
        %p344 = pneg %p74
        %p345 = pneg %p71
        %p346 = pneg %p95
        %p347 = pneg %p92
        %p348 = pneg %p116
        %p349 = pneg %p113
        %p350 = pneg %p137
        %p351 = pneg %p134
        %p352 = pneg %p158
        %p353 = pneg %p155
        %p354 = pneg %p184
        %p355 = pneg %p181
        %s356 = sand.u32 %s171, 1
        %s357 = scalar_lea.sflag [#allocation4], %s356
        %s358 = sand.u32 %s171, 1
        %s359 = smul.addr %s358, 64
        %s360 = scalar_lea.vmem [#allocation11], %s359
        %s361 = smul.u32 16, %s27
        %s362 = smul.u32 16, %s27
        %s363 = smul.u32 16, %s27
        %v364 = vld [vmem:[%s311] sm:$0xf]
        %v365 = vld [vmem:[%s311 + $0x4] sm:$0xf]
        %v366 = vld [vmem:[%s311 + $0x8] sm:$0xf]
        %v367 = vld [vmem:[%s311 + $0xc] sm:$0xf]
        %v368 = vld [vmem:[%s311 + $0x10] sm:$0xf]
        %v369 = vld [vmem:[%s311 + $0x14] sm:$0xf]
        %v370 = vld [vmem:[%s311 + $0x18] sm:$0xf]
        %v371 = vld [vmem:[%s311 + $0x1c] sm:$0xf]
        %v372 = vld [vmem:[%s311 + $0x20] sm:$0xf]
        %v373 = vld [vmem:[%s311 + $0x24] sm:$0xf]
        %v374 = vld [vmem:[%s311 + $0x28] sm:$0xf]
        %v375 = vld [vmem:[%s311 + $0x2c] sm:$0xf]
        %v376 = vld [vmem:[%s311 + $0x30] sm:$0xf]
        %v377 = vld [vmem:[%s311 + $0x34] sm:$0xf]
        %v378 = vld [vmem:[%s311 + $0x38] sm:$0xf]
        %v379 = vld [vmem:[%s311 + $0x3c] sm:$0xf]
        %v380 = vld [vmem:[#allocation7] sm:$0xff]
        %v381 = vld [vmem:[#allocation7 + $0x8] sm:$0xff]
        %v382 = vld [vmem:[#allocation7 + $0x10] sm:$0xff]
        %v383 = vld [vmem:[#allocation7 + $0x18] sm:$0xff]
        %v384 = vld [vmem:[#allocation7 + $0x20] sm:$0xff]
        %v385 = vld [vmem:[#allocation7 + $0x28] sm:$0xff]
        %v386 = vld [vmem:[#allocation7 + $0x30] sm:$0xff]
        %v387 = vld [vmem:[#allocation7 + $0x38] sm:$0xff]
        %v388 = vld [vmem:[#allocation7 + $0x40] sm:$0xff]
        %v389 = vld [vmem:[#allocation7 + $0x48] sm:$0xff]
        %v390 = vld [vmem:[#allocation7 + $0x50] sm:$0xff]
        %v391 = vld [vmem:[#allocation7 + $0x58] sm:$0xff]
        %v392 = vld [vmem:[#allocation7 + $0x60] sm:$0xff]
        %v393 = vld [vmem:[#allocation7 + $0x68] sm:$0xff]
        %v394 = vld [vmem:[#allocation7 + $0x70] sm:$0xff]
        %v395 = vld [vmem:[#allocation7 + $0x78] sm:$0xff]
        %v396 = vld [vmem:[#allocation7 + $0x80] sm:$0xff]
        %v397 = vld [vmem:[#allocation7 + $0x88] sm:$0xff]
        %v398 = vld [vmem:[#allocation7 + $0x90] sm:$0xff]
        %v399 = vld [vmem:[#allocation7 + $0x98] sm:$0xff]
        %v400 = vld [vmem:[#allocation7 + $0xa0] sm:$0xff]
        %v401 = vld [vmem:[#allocation7 + $0xa8] sm:$0xff]
        %v402 = vld [vmem:[#allocation7 + $0xb0] sm:$0xff]
        %v403 = vld [vmem:[#allocation7 + $0xb8] sm:$0xff]
        %v404 = vld [vmem:[#allocation7 + $0xc0] sm:$0xff]
        %v405 = vld [vmem:[#allocation7 + $0xc8] sm:$0xff]
        %v406 = vld [vmem:[#allocation7 + $0xd0] sm:$0xff]
        %v407 = vld [vmem:[#allocation7 + $0xd8] sm:$0xff]
        %v408 = vld [vmem:[#allocation7 + $0xe0] sm:$0xff]
        %v409 = vld [vmem:[#allocation7 + $0xe8] sm:$0xff]
        %v410 = vld [vmem:[#allocation7 + $0xf0] sm:$0xff]
        %v411 = vld [vmem:[#allocation7 + $0xf8] sm:$0xff]
        %v412 = vld [vmem:[#allocation7 + $0x100] sm:$0xff]
        %v413 = vld [vmem:[#allocation7 + $0x108] sm:$0xff]
        %v414 = vld [vmem:[#allocation7 + $0x110] sm:$0xff]
        %v415 = vld [vmem:[#allocation7 + $0x118] sm:$0xff]
        %v416 = vld [vmem:[#allocation7 + $0x120] sm:$0xff]
        %v417 = vld [vmem:[#allocation7 + $0x128] sm:$0xff]
        %v418 = vld [vmem:[#allocation7 + $0x130] sm:$0xff]
        %v419 = vld [vmem:[#allocation7 + $0x138] sm:$0xff]
        %v420 = vld [vmem:[#allocation7 + $0x140] sm:$0xff]
        %v421 = vld [vmem:[#allocation7 + $0x148] sm:$0xff]
        %v422 = vld [vmem:[#allocation7 + $0x150] sm:$0xff]
        %v423 = vld [vmem:[#allocation7 + $0x158] sm:$0xff]
        %v424 = vld [vmem:[#allocation7 + $0x160] sm:$0xff]
        %v425 = vld [vmem:[#allocation7 + $0x168] sm:$0xff]
        %v426 = vld [vmem:[#allocation7 + $0x170] sm:$0xff]
        %v427 = vld [vmem:[#allocation7 + $0x178] sm:$0xff]
        %v428 = vld [vmem:[#allocation7 + $0x180] sm:$0xff]
        %v429 = vld [vmem:[#allocation7 + $0x188] sm:$0xff]
        %v430 = vld [vmem:[#allocation7 + $0x190] sm:$0xff]
        %v431 = vld [vmem:[#allocation7 + $0x198] sm:$0xff]
        %v432 = vld [vmem:[#allocation7 + $0x1a0] sm:$0xff]
        %v433 = vld [vmem:[#allocation7 + $0x1a8] sm:$0xff]
        %v434 = vld [vmem:[#allocation7 + $0x1b0] sm:$0xff]
        %v435 = vld [vmem:[#allocation7 + $0x1b8] sm:$0xff]
        %v436 = vld [vmem:[#allocation7 + $0x1c0] sm:$0xff]
        %v437 = vld [vmem:[#allocation7 + $0x1c8] sm:$0xff]
        %v438 = vld [vmem:[#allocation7 + $0x1d0] sm:$0xff]
        %v439 = vld [vmem:[#allocation7 + $0x1d8] sm:$0xff]
        %v440 = vld [vmem:[#allocation7 + $0x1e0] sm:$0xff]
        %v441 = vld [vmem:[#allocation7 + $0x1e8] sm:$0xff]
        %v442 = vld [vmem:[#allocation7 + $0x1f0] sm:$0xff]
        %v443 = vld [vmem:[#allocation7 + $0x1f8] sm:$0xff]
        %v444 = vld [vmem:[#allocation8] sm:$0xff]
        %v446 = vperm.slane %v444, 0
        %v447 = vperm.slane %v444, 1
        %v448 = vperm.slane %v444, 2
        %v449 = vperm.slane %v444, 3
        %v450 = vperm.slane %v444, 4
        %v451 = vperm.slane %v444, 5
        %v452 = vperm.slane %v444, 6
        %v453 = vperm.slane %v444, 7
        %v478 = vunpack.c.l.b16 %v364
        %v479 = vunpack.c.l.b16 %v365
        %v480 = vunpack.c.l.b16 %v366
        %v481 = vunpack.c.l.b16 %v367
        %v482 = vunpack.c.l.b16 %v368
        %v483 = vunpack.c.l.b16 %v369
        %v484 = vunpack.c.l.b16 %v370
        %v485 = vunpack.c.l.b16 %v371
        %v486 = vunpack.c.l.b16 %v372
        %v487 = vunpack.c.l.b16 %v373
        %v488 = vunpack.c.l.b16 %v374
        %v489 = vunpack.c.l.b16 %v375
        %v490 = vunpack.c.l.b16 %v376
        %v491 = vunpack.c.l.b16 %v377
        %v492 = vunpack.c.l.b16 %v378
        %v493 = vunpack.c.l.b16 %v379
        %v494 = vpack.c.b16 %v479, %v478
        %v495 = vpack.c.b16 %v481, %v480
        %v496 = vpack.c.b16 %v483, %v482
        %v497 = vpack.c.b16 %v485, %v484
        %v498 = vpack.c.b16 %v487, %v486
        %v499 = vpack.c.b16 %v489, %v488
        %v500 = vpack.c.b16 %v491, %v490
        %v501 = vpack.c.b16 %v493, %v492
        %v574 = vunpack.c.l.b16 %v380
        %v575 = vunpack.c.h.b16 %v380
        %v576 = vunpack.c.l.b16 %v381
        %v577 = vunpack.c.h.b16 %v381
        %v578 = vunpack.c.l.b16 %v382
        %v579 = vunpack.c.h.b16 %v382
        %v580 = vunpack.c.l.b16 %v383
        %v581 = vunpack.c.h.b16 %v383
        %v582 = vunpack.c.l.b16 %v384
        %v583 = vunpack.c.h.b16 %v384
        %v584 = vunpack.c.l.b16 %v385
        %v585 = vunpack.c.h.b16 %v385
        %v586 = vunpack.c.l.b16 %v386
        %v587 = vunpack.c.h.b16 %v386
        %v588 = vunpack.c.l.b16 %v387
        %v589 = vunpack.c.h.b16 %v387
        %v590 = vunpack.c.l.b16 %v388
        %v591 = vunpack.c.h.b16 %v388
        %v592 = vunpack.c.l.b16 %v389
        %v593 = vunpack.c.h.b16 %v389
        %v594 = vunpack.c.l.b16 %v390
        %v595 = vunpack.c.h.b16 %v390
        %v596 = vunpack.c.l.b16 %v391
        %v597 = vunpack.c.h.b16 %v391
        %v598 = vunpack.c.l.b16 %v392
        %v599 = vunpack.c.h.b16 %v392
        %v600 = vunpack.c.l.b16 %v393
        %v601 = vunpack.c.h.b16 %v393
        %v602 = vunpack.c.l.b16 %v394
        %v603 = vunpack.c.h.b16 %v394
        %v604 = vunpack.c.l.b16 %v395
        %v605 = vunpack.c.h.b16 %v395
        %v606 = vunpack.c.l.b16 %v396
        %v607 = vunpack.c.h.b16 %v396
        %v608 = vunpack.c.l.b16 %v397
        %v609 = vunpack.c.h.b16 %v397
        %v610 = vunpack.c.l.b16 %v398
        %v611 = vunpack.c.h.b16 %v398
        %v612 = vunpack.c.l.b16 %v399
        %v613 = vunpack.c.h.b16 %v399
        %v614 = vunpack.c.l.b16 %v400
        %v615 = vunpack.c.h.b16 %v400
        %v616 = vunpack.c.l.b16 %v401
        %v617 = vunpack.c.h.b16 %v401
        %v618 = vunpack.c.l.b16 %v402
        %v619 = vunpack.c.h.b16 %v402
        %v620 = vunpack.c.l.b16 %v403
        %v621 = vunpack.c.h.b16 %v403
        %v622 = vunpack.c.l.b16 %v404
        %v623 = vunpack.c.h.b16 %v404
        %v624 = vunpack.c.l.b16 %v405
        %v625 = vunpack.c.h.b16 %v405
        %v626 = vunpack.c.l.b16 %v406
        %v627 = vunpack.c.h.b16 %v406
        %v628 = vunpack.c.l.b16 %v407
        %v629 = vunpack.c.h.b16 %v407
        %v630 = vunpack.c.l.b16 %v408
        %v631 = vunpack.c.h.b16 %v408
        %v632 = vunpack.c.l.b16 %v409
        %v633 = vunpack.c.h.b16 %v409
        %v634 = vunpack.c.l.b16 %v410
        %v635 = vunpack.c.h.b16 %v410
        %v636 = vunpack.c.l.b16 %v411
        %v637 = vunpack.c.h.b16 %v411
        %v638 = vunpack.c.l.b16 %v412
        %v639 = vunpack.c.h.b16 %v412
        %v640 = vunpack.c.l.b16 %v413
        %v641 = vunpack.c.h.b16 %v413
        %v642 = vunpack.c.l.b16 %v414
        %v643 = vunpack.c.h.b16 %v414
        %v644 = vunpack.c.l.b16 %v415
        %v645 = vunpack.c.h.b16 %v415
        %v646 = vunpack.c.l.b16 %v416
        %v647 = vunpack.c.h.b16 %v416
        %v648 = vunpack.c.l.b16 %v417
        %v649 = vunpack.c.h.b16 %v417
        %v650 = vunpack.c.l.b16 %v418
        %v651 = vunpack.c.h.b16 %v418
        %v652 = vunpack.c.l.b16 %v419
        %v653 = vunpack.c.h.b16 %v419
        %v654 = vunpack.c.l.b16 %v420
        %v655 = vunpack.c.h.b16 %v420
        %v656 = vunpack.c.l.b16 %v421
        %v657 = vunpack.c.h.b16 %v421
        %v658 = vunpack.c.l.b16 %v422
        %v659 = vunpack.c.h.b16 %v422
        %v660 = vunpack.c.l.b16 %v423
        %v661 = vunpack.c.h.b16 %v423
        %v662 = vunpack.c.l.b16 %v424
        %v663 = vunpack.c.h.b16 %v424
        %v664 = vunpack.c.l.b16 %v425
        %v665 = vunpack.c.h.b16 %v425
        %v666 = vunpack.c.l.b16 %v426
        %v667 = vunpack.c.h.b16 %v426
        %v668 = vunpack.c.l.b16 %v427
        %v669 = vunpack.c.h.b16 %v427
        %v670 = vunpack.c.l.b16 %v428
        %v671 = vunpack.c.h.b16 %v428
        %v672 = vunpack.c.l.b16 %v429
        %v673 = vunpack.c.h.b16 %v429
        %v674 = vunpack.c.l.b16 %v430
        %v675 = vunpack.c.h.b16 %v430
        %v676 = vunpack.c.l.b16 %v431
        %v677 = vunpack.c.h.b16 %v431
        %v678 = vunpack.c.l.b16 %v432
        %v679 = vunpack.c.h.b16 %v432
        %v680 = vunpack.c.l.b16 %v433
        %v681 = vunpack.c.h.b16 %v433
        %v682 = vunpack.c.l.b16 %v434
        %v683 = vunpack.c.h.b16 %v434
        %v684 = vunpack.c.l.b16 %v435
        %v685 = vunpack.c.h.b16 %v435
        %v686 = vunpack.c.l.b16 %v436
        %v687 = vunpack.c.h.b16 %v436
        %v688 = vunpack.c.l.b16 %v437
        %v689 = vunpack.c.h.b16 %v437
        %v690 = vunpack.c.l.b16 %v438
        %v691 = vunpack.c.h.b16 %v438
        %v692 = vunpack.c.l.b16 %v439
        %v693 = vunpack.c.h.b16 %v439
        %v694 = vunpack.c.l.b16 %v440
        %v695 = vunpack.c.h.b16 %v440
        %v696 = vunpack.c.l.b16 %v441
        %v697 = vunpack.c.h.b16 %v441
        %v698 = vunpack.c.l.b16 %v442
        %v699 = vunpack.c.h.b16 %v442
        %v700 = vunpack.c.l.b16 %v443
        %v701 = vunpack.c.h.b16 %v443
        %v702 = vpack.c.b16 %v582, %v574
        %v703 = vpack.c.b16 %v583, %v575
        %v704 = vpack.c.b16 %v584, %v576
        %v705 = vpack.c.b16 %v585, %v577
        %v706 = vpack.c.b16 %v586, %v578
        %v707 = vpack.c.b16 %v587, %v579
        %v708 = vpack.c.b16 %v588, %v580
        %v709 = vpack.c.b16 %v589, %v581
        %v710 = vpack.c.b16 %v598, %v590
        %v711 = vpack.c.b16 %v599, %v591
        %v712 = vpack.c.b16 %v600, %v592
        %v713 = vpack.c.b16 %v601, %v593
        %v714 = vpack.c.b16 %v602, %v594
        %v715 = vpack.c.b16 %v603, %v595
        %v716 = vpack.c.b16 %v604, %v596
        %v717 = vpack.c.b16 %v605, %v597
        %v718 = vpack.c.b16 %v614, %v606
        %v719 = vpack.c.b16 %v615, %v607
        %v720 = vpack.c.b16 %v616, %v608
        %v721 = vpack.c.b16 %v617, %v609
        %v722 = vpack.c.b16 %v618, %v610
        %v723 = vpack.c.b16 %v619, %v611
        %v724 = vpack.c.b16 %v620, %v612
        %v725 = vpack.c.b16 %v621, %v613
        %v726 = vpack.c.b16 %v630, %v622
        %v727 = vpack.c.b16 %v631, %v623
        %v728 = vpack.c.b16 %v632, %v624
        %v729 = vpack.c.b16 %v633, %v625
        %v730 = vpack.c.b16 %v634, %v626
        %v731 = vpack.c.b16 %v635, %v627
        %v732 = vpack.c.b16 %v636, %v628
        %v733 = vpack.c.b16 %v637, %v629
        %v734 = vpack.c.b16 %v646, %v638
        %v735 = vpack.c.b16 %v647, %v639
        %v736 = vpack.c.b16 %v648, %v640
        %v737 = vpack.c.b16 %v649, %v641
        %v738 = vpack.c.b16 %v650, %v642
        %v739 = vpack.c.b16 %v651, %v643
        %v740 = vpack.c.b16 %v652, %v644
        %v741 = vpack.c.b16 %v653, %v645
        %v742 = vpack.c.b16 %v662, %v654
        %v743 = vpack.c.b16 %v663, %v655
        %v744 = vpack.c.b16 %v664, %v656
        %v745 = vpack.c.b16 %v665, %v657
        %v746 = vpack.c.b16 %v666, %v658
        %v747 = vpack.c.b16 %v667, %v659
        %v748 = vpack.c.b16 %v668, %v660
        %v749 = vpack.c.b16 %v669, %v661
        %v750 = vpack.c.b16 %v678, %v670
        %v751 = vpack.c.b16 %v679, %v671
        %v752 = vpack.c.b16 %v680, %v672
        %v753 = vpack.c.b16 %v681, %v673
        %v754 = vpack.c.b16 %v682, %v674
        %v755 = vpack.c.b16 %v683, %v675
        %v756 = vpack.c.b16 %v684, %v676
        %v757 = vpack.c.b16 %v685, %v677
        %v758 = vpack.c.b16 %v694, %v686
        %v759 = vpack.c.b16 %v695, %v687
        %v760 = vpack.c.b16 %v696, %v688
        %v761 = vpack.c.b16 %v697, %v689
        %v762 = vpack.c.b16 %v698, %v690
        %v763 = vpack.c.b16 %v699, %v691
        %v764 = vpack.c.b16 %v700, %v692
        %v765 = vpack.c.b16 %v701, %v693
        %830 = vmatpush.bf16.msra.mxu0 %v758
        %831 = vmatpush.bf16.msra.mxu0 %v750
        %832 = vmatpush.bf16.msra.mxu0 %v742
        %833 = vmatpush.bf16.msra.mxu0 %v734
        %834 = vmatpush.bf16.msra.mxu0 %v726
        %835 = vmatpush.bf16.msra.mxu0 %v718
        %836 = vmatpush.bf16.msra.mxu0 %v710
        %837 = vmatpush.bf16.msra.mxu0 %v702
        %838 = vmatmul.bf16.gmra.mxu0 %v494
        %v839 = vpop.f32.mrf.mxu0
        %v840 = vadd.f32 %v446, %v839
        %v841 = vpop.f32.mrf.mxu0
        %v842 = vadd.f32 %v446, %v841
        %843 = vmatmul.bf16.gmra.mxu0 %v495
        %v844 = vpop.f32.mrf.mxu0
        %v845 = vadd.f32 %v446, %v844
        %v846 = vpop.f32.mrf.mxu0
        %v847 = vadd.f32 %v446, %v846
        %848 = vmatmul.bf16.gmra.mxu0 %v496
        %v849 = vpop.f32.mrf.mxu0
        %v850 = vadd.f32 %v446, %v849
        %v851 = vpop.f32.mrf.mxu0
        %v852 = vadd.f32 %v446, %v851
        %853 = vmatmul.bf16.gmra.mxu0 %v497
        %v854 = vpop.f32.mrf.mxu0
        %v855 = vadd.f32 %v446, %v854
        %v856 = vpop.f32.mrf.mxu0
        %v857 = vadd.f32 %v446, %v856
        %858 = vmatmul.bf16.gmra.mxu0 %v498
        %v859 = vpop.f32.mrf.mxu0
        %v860 = vadd.f32 %v446, %v859
        %v861 = vpop.f32.mrf.mxu0
        %v862 = vadd.f32 %v446, %v861
        %863 = vmatmul.bf16.gmra.mxu0 %v499
        %v864 = vpop.f32.mrf.mxu0
        %v865 = vadd.f32 %v446, %v864
        %v866 = vpop.f32.mrf.mxu0
        %v867 = vadd.f32 %v446, %v866
        %868 = vmatmul.bf16.gmra.mxu0 %v500
        %v869 = vpop.f32.mrf.mxu0
        %v870 = vadd.f32 %v446, %v869
        %v871 = vpop.f32.mrf.mxu0
        %v872 = vadd.f32 %v446, %v871
        %873 = vmatmul.bf16.gmra.mxu0 %v501
        %v874 = vpop.f32.mrf.mxu0
        %v875 = vadd.f32 %v446, %v874
        %v876 = vpop.f32.mrf.mxu0
        %v877 = vadd.f32 %v446, %v876
        %878 = vdwg.mxu0
        %879 = vmatpush.bf16.msra.mxu0 %v759
        %880 = vmatpush.bf16.msra.mxu0 %v751
        %881 = vmatpush.bf16.msra.mxu0 %v743
        %882 = vmatpush.bf16.msra.mxu0 %v735
        %883 = vmatpush.bf16.msra.mxu0 %v727
        %884 = vmatpush.bf16.msra.mxu0 %v719
        %885 = vmatpush.bf16.msra.mxu0 %v711
        %886 = vmatpush.bf16.msra.mxu0 %v703
        %887 = vmatmul.bf16.gmra.mxu0 %v494
        %v888 = vpop.f32.mrf.mxu0
        %v889 = vadd.f32 %v447, %v888
        %v890 = vpop.f32.mrf.mxu0
        %v891 = vadd.f32 %v447, %v890
        %892 = vmatmul.bf16.gmra.mxu0 %v495
        %v893 = vpop.f32.mrf.mxu0
        %v894 = vadd.f32 %v447, %v893
        %v895 = vpop.f32.mrf.mxu0
        %v896 = vadd.f32 %v447, %v895
        %897 = vmatmul.bf16.gmra.mxu0 %v496
        %v898 = vpop.f32.mrf.mxu0
        %v899 = vadd.f32 %v447, %v898
        %v900 = vpop.f32.mrf.mxu0
        %v901 = vadd.f32 %v447, %v900
        %902 = vmatmul.bf16.gmra.mxu0 %v497
        %v903 = vpop.f32.mrf.mxu0
        %v904 = vadd.f32 %v447, %v903
        %v905 = vpop.f32.mrf.mxu0
        %v906 = vadd.f32 %v447, %v905
        %907 = vmatmul.bf16.gmra.mxu0 %v498
        %v908 = vpop.f32.mrf.mxu0
        %v909 = vadd.f32 %v447, %v908
        %v910 = vpop.f32.mrf.mxu0
        %v911 = vadd.f32 %v447, %v910
        %912 = vmatmul.bf16.gmra.mxu0 %v499
        %v913 = vpop.f32.mrf.mxu0
        %v914 = vadd.f32 %v447, %v913
        %v915 = vpop.f32.mrf.mxu0
        %v916 = vadd.f32 %v447, %v915
        %917 = vmatmul.bf16.gmra.mxu0 %v500
        %v918 = vpop.f32.mrf.mxu0
        %v919 = vadd.f32 %v447, %v918
        %v920 = vpop.f32.mrf.mxu0
        %v921 = vadd.f32 %v447, %v920
        %922 = vmatmul.bf16.gmra.mxu0 %v501
        %v923 = vpop.f32.mrf.mxu0
        %v924 = vadd.f32 %v447, %v923
        %v925 = vpop.f32.mrf.mxu0
        %v926 = vadd.f32 %v447, %v925
        %927 = vdwg.mxu0
        %928 = vmatpush.bf16.msra.mxu0 %v760
        %929 = vmatpush.bf16.msra.mxu0 %v752
        %930 = vmatpush.bf16.msra.mxu0 %v744
        %931 = vmatpush.bf16.msra.mxu0 %v736
        %932 = vmatpush.bf16.msra.mxu0 %v728
        %933 = vmatpush.bf16.msra.mxu0 %v720
        %934 = vmatpush.bf16.msra.mxu0 %v712
        %935 = vmatpush.bf16.msra.mxu0 %v704
        %936 = vmatmul.bf16.gmra.mxu0 %v494
        %v937 = vpop.f32.mrf.mxu0
        %v938 = vadd.f32 %v448, %v937
        %v939 = vpop.f32.mrf.mxu0
        %v940 = vadd.f32 %v448, %v939
        %941 = vmatmul.bf16.gmra.mxu0 %v495
        %v942 = vpop.f32.mrf.mxu0
        %v943 = vadd.f32 %v448, %v942
        %v944 = vpop.f32.mrf.mxu0
        %v945 = vadd.f32 %v448, %v944
        %946 = vmatmul.bf16.gmra.mxu0 %v496
        %v947 = vpop.f32.mrf.mxu0
        %v948 = vadd.f32 %v448, %v947
        %v949 = vpop.f32.mrf.mxu0
        %v950 = vadd.f32 %v448, %v949
        %951 = vmatmul.bf16.gmra.mxu0 %v497
        %v952 = vpop.f32.mrf.mxu0
        %v953 = vadd.f32 %v448, %v952
        %v954 = vpop.f32.mrf.mxu0
        %v955 = vadd.f32 %v448, %v954
        %956 = vmatmul.bf16.gmra.mxu0 %v498
        %v957 = vpop.f32.mrf.mxu0
        %v958 = vadd.f32 %v448, %v957
        %v959 = vpop.f32.mrf.mxu0
        %v960 = vadd.f32 %v448, %v959
        %961 = vmatmul.bf16.gmra.mxu0 %v499
        %v962 = vpop.f32.mrf.mxu0
        %v963 = vadd.f32 %v448, %v962
        %v964 = vpop.f32.mrf.mxu0
        %v965 = vadd.f32 %v448, %v964
        %966 = vmatmul.bf16.gmra.mxu0 %v500
        %v967 = vpop.f32.mrf.mxu0
        %v968 = vadd.f32 %v448, %v967
        %v969 = vpop.f32.mrf.mxu0
        %v970 = vadd.f32 %v448, %v969
        %971 = vmatmul.bf16.gmra.mxu0 %v501
        %v972 = vpop.f32.mrf.mxu0
        %v973 = vadd.f32 %v448, %v972
        %v974 = vpop.f32.mrf.mxu0
        %v975 = vadd.f32 %v448, %v974
        %976 = vdwg.mxu0
        %977 = vmatpush.bf16.msra.mxu0 %v761
        %978 = vmatpush.bf16.msra.mxu0 %v753
        %979 = vmatpush.bf16.msra.mxu0 %v745
        %980 = vmatpush.bf16.msra.mxu0 %v737
        %981 = vmatpush.bf16.msra.mxu0 %v729
        %982 = vmatpush.bf16.msra.mxu0 %v721
        %983 = vmatpush.bf16.msra.mxu0 %v713
        %984 = vmatpush.bf16.msra.mxu0 %v705
        %985 = vmatmul.bf16.gmra.mxu0 %v494
        %v986 = vpop.f32.mrf.mxu0
        %v987 = vadd.f32 %v449, %v986
        %v988 = vpop.f32.mrf.mxu0
        %v989 = vadd.f32 %v449, %v988
        %990 = vmatmul.bf16.gmra.mxu0 %v495
        %v991 = vpop.f32.mrf.mxu0
        %v992 = vadd.f32 %v449, %v991
        %v993 = vpop.f32.mrf.mxu0
        %v994 = vadd.f32 %v449, %v993
        %995 = vmatmul.bf16.gmra.mxu0 %v496
        %v996 = vpop.f32.mrf.mxu0
        %v997 = vadd.f32 %v449, %v996
        %v998 = vpop.f32.mrf.mxu0
        %v999 = vadd.f32 %v449, %v998
        %1000 = vmatmul.bf16.gmra.mxu0 %v497
        %v1001 = vpop.f32.mrf.mxu0
        %v1002 = vadd.f32 %v449, %v1001
        %v1003 = vpop.f32.mrf.mxu0
        %v1004 = vadd.f32 %v449, %v1003
        %1005 = vmatmul.bf16.gmra.mxu0 %v498
        %v1006 = vpop.f32.mrf.mxu0
        %v1007 = vadd.f32 %v449, %v1006
        %v1008 = vpop.f32.mrf.mxu0
        %v1009 = vadd.f32 %v449, %v1008
        %1010 = vmatmul.bf16.gmra.mxu0 %v499
        %v1011 = vpop.f32.mrf.mxu0
        %v1012 = vadd.f32 %v449, %v1011
        %v1013 = vpop.f32.mrf.mxu0
        %v1014 = vadd.f32 %v449, %v1013
        %1015 = vmatmul.bf16.gmra.mxu0 %v500
        %v1016 = vpop.f32.mrf.mxu0
        %v1017 = vadd.f32 %v449, %v1016
        %v1018 = vpop.f32.mrf.mxu0
        %v1019 = vadd.f32 %v449, %v1018
        %1020 = vmatmul.bf16.gmra.mxu0 %v501
        %v1021 = vpop.f32.mrf.mxu0
        %v1022 = vadd.f32 %v449, %v1021
        %v1023 = vpop.f32.mrf.mxu0
        %v1024 = vadd.f32 %v449, %v1023
        %1025 = vdwg.mxu0
        %1026 = vmatpush.bf16.msra.mxu0 %v762
        %1027 = vmatpush.bf16.msra.mxu0 %v754
        %1028 = vmatpush.bf16.msra.mxu0 %v746
        %1029 = vmatpush.bf16.msra.mxu0 %v738
        %1030 = vmatpush.bf16.msra.mxu0 %v730
        %1031 = vmatpush.bf16.msra.mxu0 %v722
        %1032 = vmatpush.bf16.msra.mxu0 %v714
        %1033 = vmatpush.bf16.msra.mxu0 %v706
        %1034 = vmatmul.bf16.gmra.mxu0 %v494
        %v1035 = vpop.f32.mrf.mxu0
        %v1036 = vadd.f32 %v450, %v1035
        %v1037 = vpop.f32.mrf.mxu0
        %v1038 = vadd.f32 %v450, %v1037
        %1039 = vmatmul.bf16.gmra.mxu0 %v495
        %v1040 = vpop.f32.mrf.mxu0
        %v1041 = vadd.f32 %v450, %v1040
        %v1042 = vpop.f32.mrf.mxu0
        %v1043 = vadd.f32 %v450, %v1042
        %1044 = vmatmul.bf16.gmra.mxu0 %v496
        %v1045 = vpop.f32.mrf.mxu0
        %v1046 = vadd.f32 %v450, %v1045
        %v1047 = vpop.f32.mrf.mxu0
        %v1048 = vadd.f32 %v450, %v1047
        %1049 = vmatmul.bf16.gmra.mxu0 %v497
        %v1050 = vpop.f32.mrf.mxu0
        %v1051 = vadd.f32 %v450, %v1050
        %v1052 = vpop.f32.mrf.mxu0
        %v1053 = vadd.f32 %v450, %v1052
        %1054 = vmatmul.bf16.gmra.mxu0 %v498
        %v1055 = vpop.f32.mrf.mxu0
        %v1056 = vadd.f32 %v450, %v1055
        %v1057 = vpop.f32.mrf.mxu0
        %v1058 = vadd.f32 %v450, %v1057
        %1059 = vmatmul.bf16.gmra.mxu0 %v499
        %v1060 = vpop.f32.mrf.mxu0
        %v1061 = vadd.f32 %v450, %v1060
        %v1062 = vpop.f32.mrf.mxu0
        %v1063 = vadd.f32 %v450, %v1062
        %1064 = vmatmul.bf16.gmra.mxu0 %v500
        %v1065 = vpop.f32.mrf.mxu0
        %v1066 = vadd.f32 %v450, %v1065
        %v1067 = vpop.f32.mrf.mxu0
        %v1068 = vadd.f32 %v450, %v1067
        %1069 = vmatmul.bf16.gmra.mxu0 %v501
        %v1070 = vpop.f32.mrf.mxu0
        %v1071 = vadd.f32 %v450, %v1070
        %v1072 = vpop.f32.mrf.mxu0
        %v1073 = vadd.f32 %v450, %v1072
        %1074 = vdwg.mxu0
        %1075 = vmatpush.bf16.msra.mxu0 %v763
        %1076 = vmatpush.bf16.msra.mxu0 %v755
        %1077 = vmatpush.bf16.msra.mxu0 %v747
        %1078 = vmatpush.bf16.msra.mxu0 %v739
        %1079 = vmatpush.bf16.msra.mxu0 %v731
        %1080 = vmatpush.bf16.msra.mxu0 %v723
        %1081 = vmatpush.bf16.msra.mxu0 %v715
        %1082 = vmatpush.bf16.msra.mxu0 %v707
        %1083 = vmatmul.bf16.gmra.mxu0 %v494
        %v1084 = vpop.f32.mrf.mxu0
        %v1085 = vadd.f32 %v451, %v1084
        %v1086 = vpop.f32.mrf.mxu0
        %v1087 = vadd.f32 %v451, %v1086
        %1088 = vmatmul.bf16.gmra.mxu0 %v495
        %v1089 = vpop.f32.mrf.mxu0
        %v1090 = vadd.f32 %v451, %v1089
        %v1091 = vpop.f32.mrf.mxu0
        %v1092 = vadd.f32 %v451, %v1091
        %1093 = vmatmul.bf16.gmra.mxu0 %v496
        %v1094 = vpop.f32.mrf.mxu0
        %v1095 = vadd.f32 %v451, %v1094
        %v1096 = vpop.f32.mrf.mxu0
        %v1097 = vadd.f32 %v451, %v1096
        %1098 = vmatmul.bf16.gmra.mxu0 %v497
        %v1099 = vpop.f32.mrf.mxu0
        %v1100 = vadd.f32 %v451, %v1099
        %v1101 = vpop.f32.mrf.mxu0
        %v1102 = vadd.f32 %v451, %v1101
        %1103 = vmatmul.bf16.gmra.mxu0 %v498
        %v1104 = vpop.f32.mrf.mxu0
        %v1105 = vadd.f32 %v451, %v1104
        %v1106 = vpop.f32.mrf.mxu0
        %v1107 = vadd.f32 %v451, %v1106
        %1108 = vmatmul.bf16.gmra.mxu0 %v499
        %v1109 = vpop.f32.mrf.mxu0
        %v1110 = vadd.f32 %v451, %v1109
        %v1111 = vpop.f32.mrf.mxu0
        %v1112 = vadd.f32 %v451, %v1111
        %1113 = vmatmul.bf16.gmra.mxu0 %v500
        %v1114 = vpop.f32.mrf.mxu0
        %v1115 = vadd.f32 %v451, %v1114
        %v1116 = vpop.f32.mrf.mxu0
        %v1117 = vadd.f32 %v451, %v1116
        %1118 = vmatmul.bf16.gmra.mxu0 %v501
        %v1119 = vpop.f32.mrf.mxu0
        %v1120 = vadd.f32 %v451, %v1119
        %v1121 = vpop.f32.mrf.mxu0
        %v1122 = vadd.f32 %v451, %v1121
        %1123 = vdwg.mxu0
        %1124 = vmatpush.bf16.msra.mxu0 %v764
        %1125 = vmatpush.bf16.msra.mxu0 %v756
        %1126 = vmatpush.bf16.msra.mxu0 %v748
        %1127 = vmatpush.bf16.msra.mxu0 %v740
        %1128 = vmatpush.bf16.msra.mxu0 %v732
        %1129 = vmatpush.bf16.msra.mxu0 %v724
        %1130 = vmatpush.bf16.msra.mxu0 %v716
        %1131 = vmatpush.bf16.msra.mxu0 %v708
        %1132 = vmatmul.bf16.gmra.mxu0 %v494
        %v1133 = vpop.f32.mrf.mxu0
        %v1134 = vadd.f32 %v452, %v1133
        %v1135 = vpop.f32.mrf.mxu0
        %v1136 = vadd.f32 %v452, %v1135
        %1137 = vmatmul.bf16.gmra.mxu0 %v495
        %v1138 = vpop.f32.mrf.mxu0
        %v1139 = vadd.f32 %v452, %v1138
        %v1140 = vpop.f32.mrf.mxu0
        %v1141 = vadd.f32 %v452, %v1140
        %1142 = vmatmul.bf16.gmra.mxu0 %v496
        %v1143 = vpop.f32.mrf.mxu0
        %v1144 = vadd.f32 %v452, %v1143
        %v1145 = vpop.f32.mrf.mxu0
        %v1146 = vadd.f32 %v452, %v1145
        %1147 = vmatmul.bf16.gmra.mxu0 %v497
        %v1148 = vpop.f32.mrf.mxu0
        %v1149 = vadd.f32 %v452, %v1148
        %v1150 = vpop.f32.mrf.mxu0
        %v1151 = vadd.f32 %v452, %v1150
        %1152 = vmatmul.bf16.gmra.mxu0 %v498
        %v1153 = vpop.f32.mrf.mxu0
        %v1154 = vadd.f32 %v452, %v1153
        %v1155 = vpop.f32.mrf.mxu0
        %v1156 = vadd.f32 %v452, %v1155
        %1157 = vmatmul.bf16.gmra.mxu0 %v499
        %v1158 = vpop.f32.mrf.mxu0
        %v1159 = vadd.f32 %v452, %v1158
        %v1160 = vpop.f32.mrf.mxu0
        %v1161 = vadd.f32 %v452, %v1160
        %1162 = vmatmul.bf16.gmra.mxu0 %v500
        %v1163 = vpop.f32.mrf.mxu0
        %v1164 = vadd.f32 %v452, %v1163
        %v1165 = vpop.f32.mrf.mxu0
        %v1166 = vadd.f32 %v452, %v1165
        %1167 = vmatmul.bf16.gmra.mxu0 %v501
        %v1168 = vpop.f32.mrf.mxu0
        %v1169 = vadd.f32 %v452, %v1168
        %v1170 = vpop.f32.mrf.mxu0
        %v1171 = vadd.f32 %v452, %v1170
        %1172 = vdwg.mxu0
        %1173 = vmatpush.bf16.msra.mxu0 %v765
        %1174 = vmatpush.bf16.msra.mxu0 %v757
        %1175 = vmatpush.bf16.msra.mxu0 %v749
        %1176 = vmatpush.bf16.msra.mxu0 %v741
        %1177 = vmatpush.bf16.msra.mxu0 %v733
        %1178 = vmatpush.bf16.msra.mxu0 %v725
        %1179 = vmatpush.bf16.msra.mxu0 %v717
        %1180 = vmatpush.bf16.msra.mxu0 %v709
        %1181 = vmatmul.bf16.gmra.mxu0 %v494
        %v1182 = vpop.f32.mrf.mxu0
        %v1183 = vadd.f32 %v453, %v1182
        %v1184 = vpop.f32.mrf.mxu0
        %v1185 = vadd.f32 %v453, %v1184
        %1186 = vmatmul.bf16.gmra.mxu0 %v495
        %v1187 = vpop.f32.mrf.mxu0
        %v1188 = vadd.f32 %v453, %v1187
        %v1189 = vpop.f32.mrf.mxu0
        %v1190 = vadd.f32 %v453, %v1189
        %1191 = vmatmul.bf16.gmra.mxu0 %v496
        %v1192 = vpop.f32.mrf.mxu0
        %v1193 = vadd.f32 %v453, %v1192
        %v1194 = vpop.f32.mrf.mxu0
        %v1195 = vadd.f32 %v453, %v1194
        %1196 = vmatmul.bf16.gmra.mxu0 %v497
        %v1197 = vpop.f32.mrf.mxu0
        %v1198 = vadd.f32 %v453, %v1197
        %v1199 = vpop.f32.mrf.mxu0
        %v1200 = vadd.f32 %v453, %v1199
        %1201 = vmatmul.bf16.gmra.mxu0 %v498
        %v1202 = vpop.f32.mrf.mxu0
        %v1203 = vadd.f32 %v453, %v1202
        %v1204 = vpop.f32.mrf.mxu0
        %v1205 = vadd.f32 %v453, %v1204
        %1206 = vmatmul.bf16.gmra.mxu0 %v499
        %v1207 = vpop.f32.mrf.mxu0
        %v1208 = vadd.f32 %v453, %v1207
        %v1209 = vpop.f32.mrf.mxu0
        %v1210 = vadd.f32 %v453, %v1209
        %1211 = vmatmul.bf16.gmra.mxu0 %v500
        %v1212 = vpop.f32.mrf.mxu0
        %v1213 = vadd.f32 %v453, %v1212
        %v1214 = vpop.f32.mrf.mxu0
        %v1215 = vadd.f32 %v453, %v1214
        %1216 = vmatmul.bf16.gmra.mxu0 %v501
        %v1217 = vpop.f32.mrf.mxu0
        %v1218 = vadd.f32 %v453, %v1217
        %v1219 = vpop.f32.mrf.mxu0
        %v1220 = vadd.f32 %v453, %v1219
        %1221 = vdwg.mxu0
        %vm1222 = vcmp.gt.f32.partialorder %v840, 0.0
        %vm1223 = vcmp.gt.f32.partialorder %v889, 0.0
        %vm1224 = vcmp.gt.f32.partialorder %v938, 0.0
        %vm1225 = vcmp.gt.f32.partialorder %v987, 0.0
        %vm1226 = vcmp.gt.f32.partialorder %v1036, 0.0
        %vm1227 = vcmp.gt.f32.partialorder %v1085, 0.0
        %vm1228 = vcmp.gt.f32.partialorder %v1134, 0.0
        %vm1229 = vcmp.gt.f32.partialorder %v1183, 0.0
        %vm1230 = vcmp.gt.f32.partialorder %v842, 0.0
        %vm1231 = vcmp.gt.f32.partialorder %v891, 0.0
        %vm1232 = vcmp.gt.f32.partialorder %v940, 0.0
        %vm1233 = vcmp.gt.f32.partialorder %v989, 0.0
        %vm1234 = vcmp.gt.f32.partialorder %v1038, 0.0
        %vm1235 = vcmp.gt.f32.partialorder %v1087, 0.0
        %vm1236 = vcmp.gt.f32.partialorder %v1136, 0.0
        %vm1237 = vcmp.gt.f32.partialorder %v1185, 0.0
        %vm1238 = vcmp.gt.f32.partialorder %v845, 0.0
        %vm1239 = vcmp.gt.f32.partialorder %v894, 0.0
        %vm1240 = vcmp.gt.f32.partialorder %v943, 0.0
        %vm1241 = vcmp.gt.f32.partialorder %v992, 0.0
        %vm1242 = vcmp.gt.f32.partialorder %v1041, 0.0
        %vm1243 = vcmp.gt.f32.partialorder %v1090, 0.0
        %vm1244 = vcmp.gt.f32.partialorder %v1139, 0.0
        %vm1245 = vcmp.gt.f32.partialorder %v1188, 0.0
        %vm1246 = vcmp.gt.f32.partialorder %v847, 0.0
        %vm1247 = vcmp.gt.f32.partialorder %v896, 0.0
        %vm1248 = vcmp.gt.f32.partialorder %v945, 0.0
        %vm1249 = vcmp.gt.f32.partialorder %v994, 0.0
        %vm1250 = vcmp.gt.f32.partialorder %v1043, 0.0
        %vm1251 = vcmp.gt.f32.partialorder %v1092, 0.0
        %vm1252 = vcmp.gt.f32.partialorder %v1141, 0.0
        %vm1253 = vcmp.gt.f32.partialorder %v1190, 0.0
        %vm1254 = vcmp.gt.f32.partialorder %v850, 0.0
        %vm1255 = vcmp.gt.f32.partialorder %v899, 0.0
        %vm1256 = vcmp.gt.f32.partialorder %v948, 0.0
        %vm1257 = vcmp.gt.f32.partialorder %v997, 0.0
        %vm1258 = vcmp.gt.f32.partialorder %v1046, 0.0
        %vm1259 = vcmp.gt.f32.partialorder %v1095, 0.0
        %vm1260 = vcmp.gt.f32.partialorder %v1144, 0.0
        %vm1261 = vcmp.gt.f32.partialorder %v1193, 0.0
        %vm1262 = vcmp.gt.f32.partialorder %v852, 0.0
        %vm1263 = vcmp.gt.f32.partialorder %v901, 0.0
        %vm1264 = vcmp.gt.f32.partialorder %v950, 0.0
        %vm1265 = vcmp.gt.f32.partialorder %v999, 0.0
        %vm1266 = vcmp.gt.f32.partialorder %v1048, 0.0
        %vm1267 = vcmp.gt.f32.partialorder %v1097, 0.0
        %vm1268 = vcmp.gt.f32.partialorder %v1146, 0.0
        %vm1269 = vcmp.gt.f32.partialorder %v1195, 0.0
        %vm1270 = vcmp.gt.f32.partialorder %v855, 0.0
        %vm1271 = vcmp.gt.f32.partialorder %v904, 0.0
        %vm1272 = vcmp.gt.f32.partialorder %v953, 0.0
        %vm1273 = vcmp.gt.f32.partialorder %v1002, 0.0
        %vm1274 = vcmp.gt.f32.partialorder %v1051, 0.0
        %vm1275 = vcmp.gt.f32.partialorder %v1100, 0.0
        %vm1276 = vcmp.gt.f32.partialorder %v1149, 0.0
        %vm1277 = vcmp.gt.f32.partialorder %v1198, 0.0
        %vm1278 = vcmp.gt.f32.partialorder %v857, 0.0
        %vm1279 = vcmp.gt.f32.partialorder %v906, 0.0
        %vm1280 = vcmp.gt.f32.partialorder %v955, 0.0
        %vm1281 = vcmp.gt.f32.partialorder %v1004, 0.0
        %vm1282 = vcmp.gt.f32.partialorder %v1053, 0.0
        %vm1283 = vcmp.gt.f32.partialorder %v1102, 0.0
        %vm1284 = vcmp.gt.f32.partialorder %v1151, 0.0
        %vm1285 = vcmp.gt.f32.partialorder %v1200, 0.0
        %vm1286 = vcmp.gt.f32.partialorder %v860, 0.0
        %vm1287 = vcmp.gt.f32.partialorder %v909, 0.0
        %vm1288 = vcmp.gt.f32.partialorder %v958, 0.0
        %vm1289 = vcmp.gt.f32.partialorder %v1007, 0.0
        %vm1290 = vcmp.gt.f32.partialorder %v1056, 0.0
        %vm1291 = vcmp.gt.f32.partialorder %v1105, 0.0
        %vm1292 = vcmp.gt.f32.partialorder %v1154, 0.0
        %vm1293 = vcmp.gt.f32.partialorder %v1203, 0.0
        %vm1294 = vcmp.gt.f32.partialorder %v862, 0.0
        %vm1295 = vcmp.gt.f32.partialorder %v911, 0.0
        %vm1296 = vcmp.gt.f32.partialorder %v960, 0.0
        %vm1297 = vcmp.gt.f32.partialorder %v1009, 0.0
        %vm1298 = vcmp.gt.f32.partialorder %v1058, 0.0
        %vm1299 = vcmp.gt.f32.partialorder %v1107, 0.0
        %vm1300 = vcmp.gt.f32.partialorder %v1156, 0.0
        %vm1301 = vcmp.gt.f32.partialorder %v1205, 0.0
        %vm1302 = vcmp.gt.f32.partialorder %v865, 0.0
        %vm1303 = vcmp.gt.f32.partialorder %v914, 0.0
        %vm1304 = vcmp.gt.f32.partialorder %v963, 0.0
        %vm1305 = vcmp.gt.f32.partialorder %v1012, 0.0
        %vm1306 = vcmp.gt.f32.partialorder %v1061, 0.0
        %vm1307 = vcmp.gt.f32.partialorder %v1110, 0.0
        %vm1308 = vcmp.gt.f32.partialorder %v1159, 0.0
        %vm1309 = vcmp.gt.f32.partialorder %v1208, 0.0
        %vm1310 = vcmp.gt.f32.partialorder %v867, 0.0
        %vm1311 = vcmp.gt.f32.partialorder %v916, 0.0
        %vm1312 = vcmp.gt.f32.partialorder %v965, 0.0
        %vm1313 = vcmp.gt.f32.partialorder %v1014, 0.0
        %vm1314 = vcmp.gt.f32.partialorder %v1063, 0.0
        %vm1315 = vcmp.gt.f32.partialorder %v1112, 0.0
        %vm1316 = vcmp.gt.f32.partialorder %v1161, 0.0
        %vm1317 = vcmp.gt.f32.partialorder %v1210, 0.0
        %vm1318 = vcmp.gt.f32.partialorder %v870, 0.0
        %vm1319 = vcmp.gt.f32.partialorder %v919, 0.0
        %vm1320 = vcmp.gt.f32.partialorder %v968, 0.0
        %vm1321 = vcmp.gt.f32.partialorder %v1017, 0.0
        %vm1322 = vcmp.gt.f32.partialorder %v1066, 0.0
        %vm1323 = vcmp.gt.f32.partialorder %v1115, 0.0
        %vm1324 = vcmp.gt.f32.partialorder %v1164, 0.0
        %vm1325 = vcmp.gt.f32.partialorder %v1213, 0.0
        %vm1326 = vcmp.gt.f32.partialorder %v872, 0.0
        %vm1327 = vcmp.gt.f32.partialorder %v921, 0.0
        %vm1328 = vcmp.gt.f32.partialorder %v970, 0.0
        %vm1329 = vcmp.gt.f32.partialorder %v1019, 0.0
        %vm1330 = vcmp.gt.f32.partialorder %v1068, 0.0
        %vm1331 = vcmp.gt.f32.partialorder %v1117, 0.0
        %vm1332 = vcmp.gt.f32.partialorder %v1166, 0.0
        %vm1333 = vcmp.gt.f32.partialorder %v1215, 0.0
        %vm1334 = vcmp.gt.f32.partialorder %v875, 0.0
        %vm1335 = vcmp.gt.f32.partialorder %v924, 0.0
        %vm1336 = vcmp.gt.f32.partialorder %v973, 0.0
        %vm1337 = vcmp.gt.f32.partialorder %v1022, 0.0
        %vm1338 = vcmp.gt.f32.partialorder %v1071, 0.0
        %vm1339 = vcmp.gt.f32.partialorder %v1120, 0.0
        %vm1340 = vcmp.gt.f32.partialorder %v1169, 0.0
        %vm1341 = vcmp.gt.f32.partialorder %v1218, 0.0
        %vm1342 = vcmp.gt.f32.partialorder %v877, 0.0
        %vm1343 = vcmp.gt.f32.partialorder %v926, 0.0
        %vm1344 = vcmp.gt.f32.partialorder %v975, 0.0
        %vm1345 = vcmp.gt.f32.partialorder %v1024, 0.0
        %vm1346 = vcmp.gt.f32.partialorder %v1073, 0.0
        %vm1347 = vcmp.gt.f32.partialorder %v1122, 0.0
        %vm1348 = vcmp.gt.f32.partialorder %v1171, 0.0
        %vm1349 = vcmp.gt.f32.partialorder %v1220, 0.0
        %v1350 = vmul.f32 %v840, 0.01
        %v1351 = vmul.f32 %v889, 0.01
        %v1352 = vmul.f32 %v938, 0.01
        %v1353 = vmul.f32 %v987, 0.01
        %v1354 = vmul.f32 %v1036, 0.01
        %v1355 = vmul.f32 %v1085, 0.01
        %v1356 = vmul.f32 %v1134, 0.01
        %v1357 = vmul.f32 %v1183, 0.01
        %v1358 = vmul.f32 %v842, 0.01
        %v1359 = vmul.f32 %v891, 0.01
        %v1360 = vmul.f32 %v940, 0.01
        %v1361 = vmul.f32 %v989, 0.01
        %v1362 = vmul.f32 %v1038, 0.01
        %v1363 = vmul.f32 %v1087, 0.01
        %v1364 = vmul.f32 %v1136, 0.01
        %v1365 = vmul.f32 %v1185, 0.01
        %v1366 = vmul.f32 %v845, 0.01
        %v1367 = vmul.f32 %v894, 0.01
        %v1368 = vmul.f32 %v943, 0.01
        %v1369 = vmul.f32 %v992, 0.01
        %v1370 = vmul.f32 %v1041, 0.01
        %v1371 = vmul.f32 %v1090, 0.01
        %v1372 = vmul.f32 %v1139, 0.01
        %v1373 = vmul.f32 %v1188, 0.01
        %v1374 = vmul.f32 %v847, 0.01
        %v1375 = vmul.f32 %v896, 0.01
        %v1376 = vmul.f32 %v945, 0.01
        %v1377 = vmul.f32 %v994, 0.01
        %v1378 = vmul.f32 %v1043, 0.01
        %v1379 = vmul.f32 %v1092, 0.01
        %v1380 = vmul.f32 %v1141, 0.01
        %v1381 = vmul.f32 %v1190, 0.01
        %v1382 = vmul.f32 %v850, 0.01
        %v1383 = vmul.f32 %v899, 0.01
        %v1384 = vmul.f32 %v948, 0.01
        %v1385 = vmul.f32 %v997, 0.01
        %v1386 = vmul.f32 %v1046, 0.01
        %v1387 = vmul.f32 %v1095, 0.01
        %v1388 = vmul.f32 %v1144, 0.01
        %v1389 = vmul.f32 %v1193, 0.01
        %v1390 = vmul.f32 %v852, 0.01
        %v1391 = vmul.f32 %v901, 0.01
        %v1392 = vmul.f32 %v950, 0.01
        %v1393 = vmul.f32 %v999, 0.01
        %v1394 = vmul.f32 %v1048, 0.01
        %v1395 = vmul.f32 %v1097, 0.01
        %v1396 = vmul.f32 %v1146, 0.01
        %v1397 = vmul.f32 %v1195, 0.01
        %v1398 = vmul.f32 %v855, 0.01
        %v1399 = vmul.f32 %v904, 0.01
        %v1400 = vmul.f32 %v953, 0.01
        %v1401 = vmul.f32 %v1002, 0.01
        %v1402 = vmul.f32 %v1051, 0.01
        %v1403 = vmul.f32 %v1100, 0.01
        %v1404 = vmul.f32 %v1149, 0.01
        %v1405 = vmul.f32 %v1198, 0.01
        %v1406 = vmul.f32 %v857, 0.01
        %v1407 = vmul.f32 %v906, 0.01
        %v1408 = vmul.f32 %v955, 0.01
        %v1409 = vmul.f32 %v1004, 0.01
        %v1410 = vmul.f32 %v1053, 0.01
        %v1411 = vmul.f32 %v1102, 0.01
        %v1412 = vmul.f32 %v1151, 0.01
        %v1413 = vmul.f32 %v1200, 0.01
        %v1414 = vmul.f32 %v860, 0.01
        %v1415 = vmul.f32 %v909, 0.01
        %v1416 = vmul.f32 %v958, 0.01
        %v1417 = vmul.f32 %v1007, 0.01
        %v1418 = vmul.f32 %v1056, 0.01
        %v1419 = vmul.f32 %v1105, 0.01
        %v1420 = vmul.f32 %v1154, 0.01
        %v1421 = vmul.f32 %v1203, 0.01
        %v1422 = vmul.f32 %v862, 0.01
        %v1423 = vmul.f32 %v911, 0.01
        %v1424 = vmul.f32 %v960, 0.01
        %v1425 = vmul.f32 %v1009, 0.01
        %v1426 = vmul.f32 %v1058, 0.01
        %v1427 = vmul.f32 %v1107, 0.01
        %v1428 = vmul.f32 %v1156, 0.01
        %v1429 = vmul.f32 %v1205, 0.01
        %v1430 = vmul.f32 %v865, 0.01
        %v1431 = vmul.f32 %v914, 0.01
        %v1432 = vmul.f32 %v963, 0.01
        %v1433 = vmul.f32 %v1012, 0.01
        %v1434 = vmul.f32 %v1061, 0.01
        %v1435 = vmul.f32 %v1110, 0.01
        %v1436 = vmul.f32 %v1159, 0.01
        %v1437 = vmul.f32 %v1208, 0.01
        %v1438 = vmul.f32 %v867, 0.01
        %v1439 = vmul.f32 %v916, 0.01
        %v1440 = vmul.f32 %v965, 0.01
        %v1441 = vmul.f32 %v1014, 0.01
        %v1442 = vmul.f32 %v1063, 0.01
        %v1443 = vmul.f32 %v1112, 0.01
        %v1444 = vmul.f32 %v1161, 0.01
        %v1445 = vmul.f32 %v1210, 0.01
        %v1446 = vmul.f32 %v870, 0.01
        %v1447 = vmul.f32 %v919, 0.01
        %v1448 = vmul.f32 %v968, 0.01
        %v1449 = vmul.f32 %v1017, 0.01
        %v1450 = vmul.f32 %v1066, 0.01
        %v1451 = vmul.f32 %v1115, 0.01
        %v1452 = vmul.f32 %v1164, 0.01
        %v1453 = vmul.f32 %v1213, 0.01
        %v1454 = vmul.f32 %v872, 0.01
        %v1455 = vmul.f32 %v921, 0.01
        %v1456 = vmul.f32 %v970, 0.01
        %v1457 = vmul.f32 %v1019, 0.01
        %v1458 = vmul.f32 %v1068, 0.01
        %v1459 = vmul.f32 %v1117, 0.01
        %v1460 = vmul.f32 %v1166, 0.01
        %v1461 = vmul.f32 %v1215, 0.01
        %v1462 = vmul.f32 %v875, 0.01
        %v1463 = vmul.f32 %v924, 0.01
        %v1464 = vmul.f32 %v973, 0.01
        %v1465 = vmul.f32 %v1022, 0.01
        %v1466 = vmul.f32 %v1071, 0.01
        %v1467 = vmul.f32 %v1120, 0.01
        %v1468 = vmul.f32 %v1169, 0.01
        %v1469 = vmul.f32 %v1218, 0.01
        %v1470 = vmul.f32 %v877, 0.01
        %v1471 = vmul.f32 %v926, 0.01
        %v1472 = vmul.f32 %v975, 0.01
        %v1473 = vmul.f32 %v1024, 0.01
        %v1474 = vmul.f32 %v1073, 0.01
        %v1475 = vmul.f32 %v1122, 0.01
        %v1476 = vmul.f32 %v1171, 0.01
        %v1477 = vmul.f32 %v1220, 0.01
        %v1478 = vsel %vm1222, %v840, %v1350
        %v1479 = vsel %vm1223, %v889, %v1351
        %v1480 = vsel %vm1224, %v938, %v1352
        %v1481 = vsel %vm1225, %v987, %v1353
        %v1482 = vsel %vm1226, %v1036, %v1354
        %v1483 = vsel %vm1227, %v1085, %v1355
        %v1484 = vsel %vm1228, %v1134, %v1356
        %v1485 = vsel %vm1229, %v1183, %v1357
        %v1486 = vsel %vm1230, %v842, %v1358
        %v1487 = vsel %vm1231, %v891, %v1359
        %v1488 = vsel %vm1232, %v940, %v1360
        %v1489 = vsel %vm1233, %v989, %v1361
        %v1490 = vsel %vm1234, %v1038, %v1362
        %v1491 = vsel %vm1235, %v1087, %v1363
        %v1492 = vsel %vm1236, %v1136, %v1364
        %v1493 = vsel %vm1237, %v1185, %v1365
        %v1494 = vsel %vm1238, %v845, %v1366
        %v1495 = vsel %vm1239, %v894, %v1367
        %v1496 = vsel %vm1240, %v943, %v1368
        %v1497 = vsel %vm1241, %v992, %v1369
        %v1498 = vsel %vm1242, %v1041, %v1370
        %v1499 = vsel %vm1243, %v1090, %v1371
        %v1500 = vsel %vm1244, %v1139, %v1372
        %v1501 = vsel %vm1245, %v1188, %v1373
        %v1502 = vsel %vm1246, %v847, %v1374
        %v1503 = vsel %vm1247, %v896, %v1375
        %v1504 = vsel %vm1248, %v945, %v1376
        %v1505 = vsel %vm1249, %v994, %v1377
        %v1506 = vsel %vm1250, %v1043, %v1378
        %v1507 = vsel %vm1251, %v1092, %v1379
        %v1508 = vsel %vm1252, %v1141, %v1380
        %v1509 = vsel %vm1253, %v1190, %v1381
        %v1510 = vsel %vm1254, %v850, %v1382
        %v1511 = vsel %vm1255, %v899, %v1383
        %v1512 = vsel %vm1256, %v948, %v1384
        %v1513 = vsel %vm1257, %v997, %v1385
        %v1514 = vsel %vm1258, %v1046, %v1386
        %v1515 = vsel %vm1259, %v1095, %v1387
        %v1516 = vsel %vm1260, %v1144, %v1388
        %v1517 = vsel %vm1261, %v1193, %v1389
        %v1518 = vsel %vm1262, %v852, %v1390
        %v1519 = vsel %vm1263, %v901, %v1391
        %v1520 = vsel %vm1264, %v950, %v1392
        %v1521 = vsel %vm1265, %v999, %v1393
        %v1522 = vsel %vm1266, %v1048, %v1394
        %v1523 = vsel %vm1267, %v1097, %v1395
        %v1524 = vsel %vm1268, %v1146, %v1396
        %v1525 = vsel %vm1269, %v1195, %v1397
        %v1526 = vsel %vm1270, %v855, %v1398
        %v1527 = vsel %vm1271, %v904, %v1399
        %v1528 = vsel %vm1272, %v953, %v1400
        %v1529 = vsel %vm1273, %v1002, %v1401
        %v1530 = vsel %vm1274, %v1051, %v1402
        %v1531 = vsel %vm1275, %v1100, %v1403
        %v1532 = vsel %vm1276, %v1149, %v1404
        %v1533 = vsel %vm1277, %v1198, %v1405
        %v1534 = vsel %vm1278, %v857, %v1406
        %v1535 = vsel %vm1279, %v906, %v1407
        %v1536 = vsel %vm1280, %v955, %v1408
        %v1537 = vsel %vm1281, %v1004, %v1409
        %v1538 = vsel %vm1282, %v1053, %v1410
        %v1539 = vsel %vm1283, %v1102, %v1411
        %v1540 = vsel %vm1284, %v1151, %v1412
        %v1541 = vsel %vm1285, %v1200, %v1413
        %v1542 = vsel %vm1286, %v860, %v1414
        %v1543 = vsel %vm1287, %v909, %v1415
        %v1544 = vsel %vm1288, %v958, %v1416
        %v1545 = vsel %vm1289, %v1007, %v1417
        %v1546 = vsel %vm1290, %v1056, %v1418
        %v1547 = vsel %vm1291, %v1105, %v1419
        %v1548 = vsel %vm1292, %v1154, %v1420
        %v1549 = vsel %vm1293, %v1203, %v1421
        %v1550 = vsel %vm1294, %v862, %v1422
        %v1551 = vsel %vm1295, %v911, %v1423
        %v1552 = vsel %vm1296, %v960, %v1424
        %v1553 = vsel %vm1297, %v1009, %v1425
        %v1554 = vsel %vm1298, %v1058, %v1426
        %v1555 = vsel %vm1299, %v1107, %v1427
        %v1556 = vsel %vm1300, %v1156, %v1428
        %v1557 = vsel %vm1301, %v1205, %v1429
        %v1558 = vsel %vm1302, %v865, %v1430
        %v1559 = vsel %vm1303, %v914, %v1431
        %v1560 = vsel %vm1304, %v963, %v1432
        %v1561 = vsel %vm1305, %v1012, %v1433
        %v1562 = vsel %vm1306, %v1061, %v1434
        %v1563 = vsel %vm1307, %v1110, %v1435
        %v1564 = vsel %vm1308, %v1159, %v1436
        %v1565 = vsel %vm1309, %v1208, %v1437
        %v1566 = vsel %vm1310, %v867, %v1438
        %v1567 = vsel %vm1311, %v916, %v1439
        %v1568 = vsel %vm1312, %v965, %v1440
        %v1569 = vsel %vm1313, %v1014, %v1441
        %v1570 = vsel %vm1314, %v1063, %v1442
        %v1571 = vsel %vm1315, %v1112, %v1443
        %v1572 = vsel %vm1316, %v1161, %v1444
        %v1573 = vsel %vm1317, %v1210, %v1445
        %v1574 = vsel %vm1318, %v870, %v1446
        %v1575 = vsel %vm1319, %v919, %v1447
        %v1576 = vsel %vm1320, %v968, %v1448
        %v1577 = vsel %vm1321, %v1017, %v1449
        %v1578 = vsel %vm1322, %v1066, %v1450
        %v1579 = vsel %vm1323, %v1115, %v1451
        %v1580 = vsel %vm1324, %v1164, %v1452
        %v1581 = vsel %vm1325, %v1213, %v1453
        %v1582 = vsel %vm1326, %v872, %v1454
        %v1583 = vsel %vm1327, %v921, %v1455
        %v1584 = vsel %vm1328, %v970, %v1456
        %v1585 = vsel %vm1329, %v1019, %v1457
        %v1586 = vsel %vm1330, %v1068, %v1458
        %v1587 = vsel %vm1331, %v1117, %v1459
        %v1588 = vsel %vm1332, %v1166, %v1460
        %v1589 = vsel %vm1333, %v1215, %v1461
        %v1590 = vsel %vm1334, %v875, %v1462
        %v1591 = vsel %vm1335, %v924, %v1463
        %v1592 = vsel %vm1336, %v973, %v1464
        %v1593 = vsel %vm1337, %v1022, %v1465
        %v1594 = vsel %vm1338, %v1071, %v1466
        %v1595 = vsel %vm1339, %v1120, %v1467
        %v1596 = vsel %vm1340, %v1169, %v1468
        %v1597 = vsel %vm1341, %v1218, %v1469
        %v1598 = vsel %vm1342, %v877, %v1470
        %v1599 = vsel %vm1343, %v926, %v1471
        %v1600 = vsel %vm1344, %v975, %v1472
        %v1601 = vsel %vm1345, %v1024, %v1473
        %v1602 = vsel %vm1346, %v1073, %v1474
        %v1603 = vsel %vm1347, %v1122, %v1475
        %v1604 = vsel %vm1348, %v1171, %v1476
        %v1605 = vsel %vm1349, %v1220, %v1477
        %v1606 = vpack.c.bf16 %v1486, %v1478
        %v1607 = vpack.c.bf16 %v1487, %v1479
        %v1608 = vpack.c.bf16 %v1488, %v1480
        %v1609 = vpack.c.bf16 %v1489, %v1481
        %v1610 = vpack.c.bf16 %v1490, %v1482
        %v1611 = vpack.c.bf16 %v1491, %v1483
        %v1612 = vpack.c.bf16 %v1492, %v1484
        %v1613 = vpack.c.bf16 %v1493, %v1485
        %v1614 = vpack.c.bf16 %v1502, %v1494
        %v1615 = vpack.c.bf16 %v1503, %v1495
        %v1616 = vpack.c.bf16 %v1504, %v1496
        %v1617 = vpack.c.bf16 %v1505, %v1497
        %v1618 = vpack.c.bf16 %v1506, %v1498
        %v1619 = vpack.c.bf16 %v1507, %v1499
        %v1620 = vpack.c.bf16 %v1508, %v1500
        %v1621 = vpack.c.bf16 %v1509, %v1501
        %v1622 = vpack.c.bf16 %v1518, %v1510
        %v1623 = vpack.c.bf16 %v1519, %v1511
        %v1624 = vpack.c.bf16 %v1520, %v1512
        %v1625 = vpack.c.bf16 %v1521, %v1513
        %v1626 = vpack.c.bf16 %v1522, %v1514
        %v1627 = vpack.c.bf16 %v1523, %v1515
        %v1628 = vpack.c.bf16 %v1524, %v1516
        %v1629 = vpack.c.bf16 %v1525, %v1517
        %v1630 = vpack.c.bf16 %v1534, %v1526
        %v1631 = vpack.c.bf16 %v1535, %v1527
        %v1632 = vpack.c.bf16 %v1536, %v1528
        %v1633 = vpack.c.bf16 %v1537, %v1529
        %v1634 = vpack.c.bf16 %v1538, %v1530
        %v1635 = vpack.c.bf16 %v1539, %v1531
        %v1636 = vpack.c.bf16 %v1540, %v1532
        %v1637 = vpack.c.bf16 %v1541, %v1533
        %v1638 = vpack.c.bf16 %v1550, %v1542
        %v1639 = vpack.c.bf16 %v1551, %v1543
        %v1640 = vpack.c.bf16 %v1552, %v1544
        %v1641 = vpack.c.bf16 %v1553, %v1545
        %v1642 = vpack.c.bf16 %v1554, %v1546
        %v1643 = vpack.c.bf16 %v1555, %v1547
        %v1644 = vpack.c.bf16 %v1556, %v1548
        %v1645 = vpack.c.bf16 %v1557, %v1549
        %v1646 = vpack.c.bf16 %v1566, %v1558
        %v1647 = vpack.c.bf16 %v1567, %v1559
        %v1648 = vpack.c.bf16 %v1568, %v1560
        %v1649 = vpack.c.bf16 %v1569, %v1561
        %v1650 = vpack.c.bf16 %v1570, %v1562
        %v1651 = vpack.c.bf16 %v1571, %v1563
        %v1652 = vpack.c.bf16 %v1572, %v1564
        %v1653 = vpack.c.bf16 %v1573, %v1565
        %v1654 = vpack.c.bf16 %v1582, %v1574
        %v1655 = vpack.c.bf16 %v1583, %v1575
        %v1656 = vpack.c.bf16 %v1584, %v1576
        %v1657 = vpack.c.bf16 %v1585, %v1577
        %v1658 = vpack.c.bf16 %v1586, %v1578
        %v1659 = vpack.c.bf16 %v1587, %v1579
        %v1660 = vpack.c.bf16 %v1588, %v1580
        %v1661 = vpack.c.bf16 %v1589, %v1581
        %v1662 = vpack.c.bf16 %v1598, %v1590
        %v1663 = vpack.c.bf16 %v1599, %v1591
        %v1664 = vpack.c.bf16 %v1600, %v1592
        %v1665 = vpack.c.bf16 %v1601, %v1593
        %v1666 = vpack.c.bf16 %v1602, %v1594
        %v1667 = vpack.c.bf16 %v1603, %v1595
        %v1668 = vpack.c.bf16 %v1604, %v1596
        %v1669 = vpack.c.bf16 %v1605, %v1597
        %v1670 = vld [vmem:[#allocation10] sm:$0xf]
        %v1671 = vld [vmem:[#allocation10 + $0x4] sm:$0xf]
        %v1672 = vld [vmem:[#allocation10 + $0x8] sm:$0xf]
        %v1673 = vld [vmem:[#allocation10 + $0xc] sm:$0xf]
        %v1674 = vld [vmem:[#allocation10 + $0x10] sm:$0xf]
        %v1675 = vld [vmem:[#allocation10 + $0x14] sm:$0xf]
        %v1676 = vld [vmem:[#allocation10 + $0x18] sm:$0xf]
        %v1677 = vld [vmem:[#allocation10 + $0x1c] sm:$0xf]
        %v1678 = vld [vmem:[#allocation10 + $0x20] sm:$0xf]
        %v1679 = vld [vmem:[#allocation10 + $0x24] sm:$0xf]
        %v1680 = vld [vmem:[#allocation10 + $0x28] sm:$0xf]
        %v1681 = vld [vmem:[#allocation10 + $0x2c] sm:$0xf]
        %v1682 = vld [vmem:[#allocation10 + $0x30] sm:$0xf]
        %v1683 = vld [vmem:[#allocation10 + $0x34] sm:$0xf]
        %v1684 = vld [vmem:[#allocation10 + $0x38] sm:$0xf]
        %v1685 = vld [vmem:[#allocation10 + $0x3c] sm:$0xf]
        %v1686 = vld [vmem:[#allocation10 + $0x40] sm:$0xf]
        %v1687 = vld [vmem:[#allocation10 + $0x44] sm:$0xf]
        %v1688 = vld [vmem:[#allocation10 + $0x48] sm:$0xf]
        %v1689 = vld [vmem:[#allocation10 + $0x4c] sm:$0xf]
        %v1690 = vld [vmem:[#allocation10 + $0x50] sm:$0xf]
        %v1691 = vld [vmem:[#allocation10 + $0x54] sm:$0xf]
        %v1692 = vld [vmem:[#allocation10 + $0x58] sm:$0xf]
        %v1693 = vld [vmem:[#allocation10 + $0x5c] sm:$0xf]
        %v1694 = vld [vmem:[#allocation10 + $0x60] sm:$0xf]
        %v1695 = vld [vmem:[#allocation10 + $0x64] sm:$0xf]
        %v1696 = vld [vmem:[#allocation10 + $0x68] sm:$0xf]
        %v1697 = vld [vmem:[#allocation10 + $0x6c] sm:$0xf]
        %v1698 = vld [vmem:[#allocation10 + $0x70] sm:$0xf]
        %v1699 = vld [vmem:[#allocation10 + $0x74] sm:$0xf]
        %v1700 = vld [vmem:[#allocation10 + $0x78] sm:$0xf]
        %v1701 = vld [vmem:[#allocation10 + $0x7c] sm:$0xf]
        %v1702 = vld [vmem:[#allocation10 + $0x80] sm:$0xf]
        %v1703 = vld [vmem:[#allocation10 + $0x84] sm:$0xf]
        %v1704 = vld [vmem:[#allocation10 + $0x88] sm:$0xf]
        %v1705 = vld [vmem:[#allocation10 + $0x8c] sm:$0xf]
        %v1706 = vld [vmem:[#allocation10 + $0x90] sm:$0xf]
        %v1707 = vld [vmem:[#allocation10 + $0x94] sm:$0xf]
        %v1708 = vld [vmem:[#allocation10 + $0x98] sm:$0xf]
        %v1709 = vld [vmem:[#allocation10 + $0x9c] sm:$0xf]
        %v1710 = vld [vmem:[#allocation10 + $0xa0] sm:$0xf]
        %v1711 = vld [vmem:[#allocation10 + $0xa4] sm:$0xf]
        %v1712 = vld [vmem:[#allocation10 + $0xa8] sm:$0xf]
        %v1713 = vld [vmem:[#allocation10 + $0xac] sm:$0xf]
        %v1714 = vld [vmem:[#allocation10 + $0xb0] sm:$0xf]
        %v1715 = vld [vmem:[#allocation10 + $0xb4] sm:$0xf]
        %v1716 = vld [vmem:[#allocation10 + $0xb8] sm:$0xf]
        %v1717 = vld [vmem:[#allocation10 + $0xbc] sm:$0xf]
        %v1718 = vld [vmem:[#allocation10 + $0xc0] sm:$0xf]
        %v1719 = vld [vmem:[#allocation10 + $0xc4] sm:$0xf]
        %v1720 = vld [vmem:[#allocation10 + $0xc8] sm:$0xf]
        %v1721 = vld [vmem:[#allocation10 + $0xcc] sm:$0xf]
        %v1722 = vld [vmem:[#allocation10 + $0xd0] sm:$0xf]
        %v1723 = vld [vmem:[#allocation10 + $0xd4] sm:$0xf]
        %v1724 = vld [vmem:[#allocation10 + $0xd8] sm:$0xf]
        %v1725 = vld [vmem:[#allocation10 + $0xdc] sm:$0xf]
        %v1726 = vld [vmem:[#allocation10 + $0xe0] sm:$0xf]
        %v1727 = vld [vmem:[#allocation10 + $0xe4] sm:$0xf]
        %v1728 = vld [vmem:[#allocation10 + $0xe8] sm:$0xf]
        %v1729 = vld [vmem:[#allocation10 + $0xec] sm:$0xf]
        %v1730 = vld [vmem:[#allocation10 + $0xf0] sm:$0xf]
        %v1731 = vld [vmem:[#allocation10 + $0xf4] sm:$0xf]
        %v1732 = vld [vmem:[#allocation10 + $0xf8] sm:$0xf]
        %v1733 = vld [vmem:[#allocation10 + $0xfc] sm:$0xf]
        %v1734 = vld [vmem:[#allocation10 + $0x100] sm:$0xf]
        %v1735 = vld [vmem:[#allocation10 + $0x104] sm:$0xf]
        %v1736 = vld [vmem:[#allocation10 + $0x108] sm:$0xf]
        %v1737 = vld [vmem:[#allocation10 + $0x10c] sm:$0xf]
        %v1738 = vld [vmem:[#allocation10 + $0x110] sm:$0xf]
        %v1739 = vld [vmem:[#allocation10 + $0x114] sm:$0xf]
        %v1740 = vld [vmem:[#allocation10 + $0x118] sm:$0xf]
        %v1741 = vld [vmem:[#allocation10 + $0x11c] sm:$0xf]
        %v1742 = vld [vmem:[#allocation10 + $0x120] sm:$0xf]
        %v1743 = vld [vmem:[#allocation10 + $0x124] sm:$0xf]
        %v1744 = vld [vmem:[#allocation10 + $0x128] sm:$0xf]
        %v1745 = vld [vmem:[#allocation10 + $0x12c] sm:$0xf]
        %v1746 = vld [vmem:[#allocation10 + $0x130] sm:$0xf]
        %v1747 = vld [vmem:[#allocation10 + $0x134] sm:$0xf]
        %v1748 = vld [vmem:[#allocation10 + $0x138] sm:$0xf]
        %v1749 = vld [vmem:[#allocation10 + $0x13c] sm:$0xf]
        %v1750 = vld [vmem:[#allocation10 + $0x140] sm:$0xf]
        %v1751 = vld [vmem:[#allocation10 + $0x144] sm:$0xf]
        %v1752 = vld [vmem:[#allocation10 + $0x148] sm:$0xf]
        %v1753 = vld [vmem:[#allocation10 + $0x14c] sm:$0xf]
        %v1754 = vld [vmem:[#allocation10 + $0x150] sm:$0xf]
        %v1755 = vld [vmem:[#allocation10 + $0x154] sm:$0xf]
        %v1756 = vld [vmem:[#allocation10 + $0x158] sm:$0xf]
        %v1757 = vld [vmem:[#allocation10 + $0x15c] sm:$0xf]
        %v1758 = vld [vmem:[#allocation10 + $0x160] sm:$0xf]
        %v1759 = vld [vmem:[#allocation10 + $0x164] sm:$0xf]
        %v1760 = vld [vmem:[#allocation10 + $0x168] sm:$0xf]
        %v1761 = vld [vmem:[#allocation10 + $0x16c] sm:$0xf]
        %v1762 = vld [vmem:[#allocation10 + $0x170] sm:$0xf]
        %v1763 = vld [vmem:[#allocation10 + $0x174] sm:$0xf]
        %v1764 = vld [vmem:[#allocation10 + $0x178] sm:$0xf]
        %v1765 = vld [vmem:[#allocation10 + $0x17c] sm:$0xf]
        %v1766 = vld [vmem:[#allocation10 + $0x180] sm:$0xf]
        %v1767 = vld [vmem:[#allocation10 + $0x184] sm:$0xf]
        %v1768 = vld [vmem:[#allocation10 + $0x188] sm:$0xf]
        %v1769 = vld [vmem:[#allocation10 + $0x18c] sm:$0xf]
        %v1770 = vld [vmem:[#allocation10 + $0x190] sm:$0xf]
        %v1771 = vld [vmem:[#allocation10 + $0x194] sm:$0xf]
        %v1772 = vld [vmem:[#allocation10 + $0x198] sm:$0xf]
        %v1773 = vld [vmem:[#allocation10 + $0x19c] sm:$0xf]
        %v1774 = vld [vmem:[#allocation10 + $0x1a0] sm:$0xf]
        %v1775 = vld [vmem:[#allocation10 + $0x1a4] sm:$0xf]
        %v1776 = vld [vmem:[#allocation10 + $0x1a8] sm:$0xf]
        %v1777 = vld [vmem:[#allocation10 + $0x1ac] sm:$0xf]
        %v1778 = vld [vmem:[#allocation10 + $0x1b0] sm:$0xf]
        %v1779 = vld [vmem:[#allocation10 + $0x1b4] sm:$0xf]
        %v1780 = vld [vmem:[#allocation10 + $0x1b8] sm:$0xf]
        %v1781 = vld [vmem:[#allocation10 + $0x1bc] sm:$0xf]
        %v1782 = vld [vmem:[#allocation10 + $0x1c0] sm:$0xf]
        %v1783 = vld [vmem:[#allocation10 + $0x1c4] sm:$0xf]
        %v1784 = vld [vmem:[#allocation10 + $0x1c8] sm:$0xf]
        %v1785 = vld [vmem:[#allocation10 + $0x1cc] sm:$0xf]
        %v1786 = vld [vmem:[#allocation10 + $0x1d0] sm:$0xf]
        %v1787 = vld [vmem:[#allocation10 + $0x1d4] sm:$0xf]
        %v1788 = vld [vmem:[#allocation10 + $0x1d8] sm:$0xf]
        %v1789 = vld [vmem:[#allocation10 + $0x1dc] sm:$0xf]
        %v1790 = vld [vmem:[#allocation10 + $0x1e0] sm:$0xf]
        %v1791 = vld [vmem:[#allocation10 + $0x1e4] sm:$0xf]
        %v1792 = vld [vmem:[#allocation10 + $0x1e8] sm:$0xf]
        %v1793 = vld [vmem:[#allocation10 + $0x1ec] sm:$0xf]
        %v1794 = vld [vmem:[#allocation10 + $0x1f0] sm:$0xf]
        %v1795 = vld [vmem:[#allocation10 + $0x1f4] sm:$0xf]
        %v1796 = vld [vmem:[#allocation10 + $0x1f8] sm:$0xf]
        %v1797 = vld [vmem:[#allocation10 + $0x1fc] sm:$0xf]
        %v1798 = vld [vmem:[%s5] sm:$0x1]
        %v1800 = vperm.slane %v1798, 0
        %v1930 = vunpack.c.l.b16 %v1670
        %v1931 = vunpack.c.l.b16 %v1671
        %v1932 = vunpack.c.l.b16 %v1672
        %v1933 = vunpack.c.l.b16 %v1673
        %v1934 = vunpack.c.l.b16 %v1674
        %v1935 = vunpack.c.l.b16 %v1675
        %v1936 = vunpack.c.l.b16 %v1676
        %v1937 = vunpack.c.l.b16 %v1677
        %v1938 = vunpack.c.l.b16 %v1678
        %v1939 = vunpack.c.l.b16 %v1679
        %v1940 = vunpack.c.l.b16 %v1680
        %v1941 = vunpack.c.l.b16 %v1681
        %v1942 = vunpack.c.l.b16 %v1682
        %v1943 = vunpack.c.l.b16 %v1683
        %v1944 = vunpack.c.l.b16 %v1684
        %v1945 = vunpack.c.l.b16 %v1685
        %v1946 = vunpack.c.l.b16 %v1686
        %v1947 = vunpack.c.l.b16 %v1687
        %v1948 = vunpack.c.l.b16 %v1688
        %v1949 = vunpack.c.l.b16 %v1689
        %v1950 = vunpack.c.l.b16 %v1690
        %v1951 = vunpack.c.l.b16 %v1691
        %v1952 = vunpack.c.l.b16 %v1692
        %v1953 = vunpack.c.l.b16 %v1693
        %v1954 = vunpack.c.l.b16 %v1694
        %v1955 = vunpack.c.l.b16 %v1695
        %v1956 = vunpack.c.l.b16 %v1696
        %v1957 = vunpack.c.l.b16 %v1697
        %v1958 = vunpack.c.l.b16 %v1698
        %v1959 = vunpack.c.l.b16 %v1699
        %v1960 = vunpack.c.l.b16 %v1700
        %v1961 = vunpack.c.l.b16 %v1701
        %v1962 = vunpack.c.l.b16 %v1702
        %v1963 = vunpack.c.l.b16 %v1703
        %v1964 = vunpack.c.l.b16 %v1704
        %v1965 = vunpack.c.l.b16 %v1705
        %v1966 = vunpack.c.l.b16 %v1706
        %v1967 = vunpack.c.l.b16 %v1707
        %v1968 = vunpack.c.l.b16 %v1708
        %v1969 = vunpack.c.l.b16 %v1709
        %v1970 = vunpack.c.l.b16 %v1710
        %v1971 = vunpack.c.l.b16 %v1711
        %v1972 = vunpack.c.l.b16 %v1712
        %v1973 = vunpack.c.l.b16 %v1713
        %v1974 = vunpack.c.l.b16 %v1714
        %v1975 = vunpack.c.l.b16 %v1715
        %v1976 = vunpack.c.l.b16 %v1716
        %v1977 = vunpack.c.l.b16 %v1717
        %v1978 = vunpack.c.l.b16 %v1718
        %v1979 = vunpack.c.l.b16 %v1719
        %v1980 = vunpack.c.l.b16 %v1720
        %v1981 = vunpack.c.l.b16 %v1721
        %v1982 = vunpack.c.l.b16 %v1722
        %v1983 = vunpack.c.l.b16 %v1723
        %v1984 = vunpack.c.l.b16 %v1724
        %v1985 = vunpack.c.l.b16 %v1725
        %v1986 = vunpack.c.l.b16 %v1726
        %v1987 = vunpack.c.l.b16 %v1727
        %v1988 = vunpack.c.l.b16 %v1728
        %v1989 = vunpack.c.l.b16 %v1729
        %v1990 = vunpack.c.l.b16 %v1730
        %v1991 = vunpack.c.l.b16 %v1731
        %v1992 = vunpack.c.l.b16 %v1732
        %v1993 = vunpack.c.l.b16 %v1733
        %v1994 = vunpack.c.l.b16 %v1734
        %v1995 = vunpack.c.l.b16 %v1735
        %v1996 = vunpack.c.l.b16 %v1736
        %v1997 = vunpack.c.l.b16 %v1737
        %v1998 = vunpack.c.l.b16 %v1738
        %v1999 = vunpack.c.l.b16 %v1739
        %v2000 = vunpack.c.l.b16 %v1740
        %v2001 = vunpack.c.l.b16 %v1741
        %v2002 = vunpack.c.l.b16 %v1742
        %v2003 = vunpack.c.l.b16 %v1743
        %v2004 = vunpack.c.l.b16 %v1744
        %v2005 = vunpack.c.l.b16 %v1745
        %v2006 = vunpack.c.l.b16 %v1746
        %v2007 = vunpack.c.l.b16 %v1747
        %v2008 = vunpack.c.l.b16 %v1748
        %v2009 = vunpack.c.l.b16 %v1749
        %v2010 = vunpack.c.l.b16 %v1750
        %v2011 = vunpack.c.l.b16 %v1751
        %v2012 = vunpack.c.l.b16 %v1752
        %v2013 = vunpack.c.l.b16 %v1753
        %v2014 = vunpack.c.l.b16 %v1754
        %v2015 = vunpack.c.l.b16 %v1755
        %v2016 = vunpack.c.l.b16 %v1756
        %v2017 = vunpack.c.l.b16 %v1757
        %v2018 = vunpack.c.l.b16 %v1758
        %v2019 = vunpack.c.l.b16 %v1759
        %v2020 = vunpack.c.l.b16 %v1760
        %v2021 = vunpack.c.l.b16 %v1761
        %v2022 = vunpack.c.l.b16 %v1762
        %v2023 = vunpack.c.l.b16 %v1763
        %v2024 = vunpack.c.l.b16 %v1764
        %v2025 = vunpack.c.l.b16 %v1765
        %v2026 = vunpack.c.l.b16 %v1766
        %v2027 = vunpack.c.l.b16 %v1767
        %v2028 = vunpack.c.l.b16 %v1768
        %v2029 = vunpack.c.l.b16 %v1769
        %v2030 = vunpack.c.l.b16 %v1770
        %v2031 = vunpack.c.l.b16 %v1771
        %v2032 = vunpack.c.l.b16 %v1772
        %v2033 = vunpack.c.l.b16 %v1773
        %v2034 = vunpack.c.l.b16 %v1774
        %v2035 = vunpack.c.l.b16 %v1775
        %v2036 = vunpack.c.l.b16 %v1776
        %v2037 = vunpack.c.l.b16 %v1777
        %v2038 = vunpack.c.l.b16 %v1778
        %v2039 = vunpack.c.l.b16 %v1779
        %v2040 = vunpack.c.l.b16 %v1780
        %v2041 = vunpack.c.l.b16 %v1781
        %v2042 = vunpack.c.l.b16 %v1782
        %v2043 = vunpack.c.l.b16 %v1783
        %v2044 = vunpack.c.l.b16 %v1784
        %v2045 = vunpack.c.l.b16 %v1785
        %v2046 = vunpack.c.l.b16 %v1786
        %v2047 = vunpack.c.l.b16 %v1787
        %v2048 = vunpack.c.l.b16 %v1788
        %v2049 = vunpack.c.l.b16 %v1789
        %v2050 = vunpack.c.l.b16 %v1790
        %v2051 = vunpack.c.l.b16 %v1791
        %v2052 = vunpack.c.l.b16 %v1792
        %v2053 = vunpack.c.l.b16 %v1793
        %v2054 = vunpack.c.l.b16 %v1794
        %v2055 = vunpack.c.l.b16 %v1795
        %v2056 = vunpack.c.l.b16 %v1796
        %v2057 = vunpack.c.l.b16 %v1797
        %v2058 = vpack.c.b16 %v1931, %v1930
        %v2059 = vpack.c.b16 %v1933, %v1932
        %v2060 = vpack.c.b16 %v1935, %v1934
        %v2061 = vpack.c.b16 %v1937, %v1936
        %v2062 = vpack.c.b16 %v1939, %v1938
        %v2063 = vpack.c.b16 %v1941, %v1940
        %v2064 = vpack.c.b16 %v1943, %v1942
        %v2065 = vpack.c.b16 %v1945, %v1944
        %v2066 = vpack.c.b16 %v1947, %v1946
        %v2067 = vpack.c.b16 %v1949, %v1948
        %v2068 = vpack.c.b16 %v1951, %v1950
        %v2069 = vpack.c.b16 %v1953, %v1952
        %v2070 = vpack.c.b16 %v1955, %v1954
        %v2071 = vpack.c.b16 %v1957, %v1956
        %v2072 = vpack.c.b16 %v1959, %v1958
        %v2073 = vpack.c.b16 %v1961, %v1960
        %v2074 = vpack.c.b16 %v1963, %v1962
        %v2075 = vpack.c.b16 %v1965, %v1964
        %v2076 = vpack.c.b16 %v1967, %v1966
        %v2077 = vpack.c.b16 %v1969, %v1968
        %v2078 = vpack.c.b16 %v1971, %v1970
        %v2079 = vpack.c.b16 %v1973, %v1972
        %v2080 = vpack.c.b16 %v1975, %v1974
        %v2081 = vpack.c.b16 %v1977, %v1976
        %v2082 = vpack.c.b16 %v1979, %v1978
        %v2083 = vpack.c.b16 %v1981, %v1980
        %v2084 = vpack.c.b16 %v1983, %v1982
        %v2085 = vpack.c.b16 %v1985, %v1984
        %v2086 = vpack.c.b16 %v1987, %v1986
        %v2087 = vpack.c.b16 %v1989, %v1988
        %v2088 = vpack.c.b16 %v1991, %v1990
        %v2089 = vpack.c.b16 %v1993, %v1992
        %v2090 = vpack.c.b16 %v1995, %v1994
        %v2091 = vpack.c.b16 %v1997, %v1996
        %v2092 = vpack.c.b16 %v1999, %v1998
        %v2093 = vpack.c.b16 %v2001, %v2000
        %v2094 = vpack.c.b16 %v2003, %v2002
        %v2095 = vpack.c.b16 %v2005, %v2004
        %v2096 = vpack.c.b16 %v2007, %v2006
        %v2097 = vpack.c.b16 %v2009, %v2008
        %v2098 = vpack.c.b16 %v2011, %v2010
        %v2099 = vpack.c.b16 %v2013, %v2012
        %v2100 = vpack.c.b16 %v2015, %v2014
        %v2101 = vpack.c.b16 %v2017, %v2016
        %v2102 = vpack.c.b16 %v2019, %v2018
        %v2103 = vpack.c.b16 %v2021, %v2020
        %v2104 = vpack.c.b16 %v2023, %v2022
        %v2105 = vpack.c.b16 %v2025, %v2024
        %v2106 = vpack.c.b16 %v2027, %v2026
        %v2107 = vpack.c.b16 %v2029, %v2028
        %v2108 = vpack.c.b16 %v2031, %v2030
        %v2109 = vpack.c.b16 %v2033, %v2032
        %v2110 = vpack.c.b16 %v2035, %v2034
        %v2111 = vpack.c.b16 %v2037, %v2036
        %v2112 = vpack.c.b16 %v2039, %v2038
        %v2113 = vpack.c.b16 %v2041, %v2040
        %v2114 = vpack.c.b16 %v2043, %v2042
        %v2115 = vpack.c.b16 %v2045, %v2044
        %v2116 = vpack.c.b16 %v2047, %v2046
        %v2117 = vpack.c.b16 %v2049, %v2048
        %v2118 = vpack.c.b16 %v2051, %v2050
        %v2119 = vpack.c.b16 %v2053, %v2052
        %v2120 = vpack.c.b16 %v2055, %v2054
        %v2121 = vpack.c.b16 %v2057, %v2056
        %2186 = vmatpush.bf16.msra.mxu0 %v2065
        %2187 = vmatpush.bf16.msra.mxu0 %v2064
        %2188 = vmatpush.bf16.msra.mxu0 %v2063
        %2189 = vmatpush.bf16.msra.mxu0 %v2062
        %2190 = vmatpush.bf16.msra.mxu0 %v2061
        %2191 = vmatpush.bf16.msra.mxu0 %v2060
        %2192 = vmatpush.bf16.msra.mxu0 %v2059
        %2193 = vmatpush.bf16.msra.mxu0 %v2058
        %2194 = vmatmul.bf16.gmra.mxu0 %v1606
        %v2195 = vpop.f32.mrf.mxu0
        %v2196 = vadd.f32 %v1800, %v2195
        %v2197 = vpop.f32.mrf.mxu0
        %v2198 = vadd.f32 %v1800, %v2197
        %2199 = vmatmul.bf16.gmra.mxu0 %v1614
        %v2200 = vpop.f32.mrf.mxu0
        %v2201 = vadd.f32 %v1800, %v2200
        %v2202 = vpop.f32.mrf.mxu0
        %v2203 = vadd.f32 %v1800, %v2202
        %2204 = vmatmul.bf16.gmra.mxu0 %v1622
        %v2205 = vpop.f32.mrf.mxu0
        %v2206 = vadd.f32 %v1800, %v2205
        %v2207 = vpop.f32.mrf.mxu0
        %v2208 = vadd.f32 %v1800, %v2207
        %2209 = vmatmul.bf16.gmra.mxu0 %v1630
        %v2210 = vpop.f32.mrf.mxu0
        %v2211 = vadd.f32 %v1800, %v2210
        %v2212 = vpop.f32.mrf.mxu0
        %v2213 = vadd.f32 %v1800, %v2212
        %2214 = vmatmul.bf16.gmra.mxu0 %v1638
        %v2215 = vpop.f32.mrf.mxu0
        %v2216 = vadd.f32 %v1800, %v2215
        %v2217 = vpop.f32.mrf.mxu0
        %v2218 = vadd.f32 %v1800, %v2217
        %2219 = vmatmul.bf16.gmra.mxu0 %v1646
        %v2220 = vpop.f32.mrf.mxu0
        %v2221 = vadd.f32 %v1800, %v2220
        %v2222 = vpop.f32.mrf.mxu0
        %v2223 = vadd.f32 %v1800, %v2222
        %2224 = vmatmul.bf16.gmra.mxu0 %v1654
        %v2225 = vpop.f32.mrf.mxu0
        %v2226 = vadd.f32 %v1800, %v2225
        %v2227 = vpop.f32.mrf.mxu0
        %v2228 = vadd.f32 %v1800, %v2227
        %2229 = vmatmul.bf16.gmra.mxu0 %v1662
        %v2230 = vpop.f32.mrf.mxu0
        %v2231 = vadd.f32 %v1800, %v2230
        %v2232 = vpop.f32.mrf.mxu0
        %v2233 = vadd.f32 %v1800, %v2232
        %2234 = vdwg.mxu0
        %2235 = vmatpush.bf16.msra.mxu0 %v2073
        %2236 = vmatpush.bf16.msra.mxu0 %v2072
        %2237 = vmatpush.bf16.msra.mxu0 %v2071
        %2238 = vmatpush.bf16.msra.mxu0 %v2070
        %2239 = vmatpush.bf16.msra.mxu0 %v2069
        %2240 = vmatpush.bf16.msra.mxu0 %v2068
        %2241 = vmatpush.bf16.msra.mxu0 %v2067
        %2242 = vmatpush.bf16.msra.mxu0 %v2066
        %2243 = vmatmul.bf16.gmra.mxu0 %v1607
        %v2244 = vpop.f32.mrf.mxu0
        %v2245 = vadd.f32 %v2196, %v2244
        %v2246 = vpop.f32.mrf.mxu0
        %v2247 = vadd.f32 %v2198, %v2246
        %2248 = vmatmul.bf16.gmra.mxu0 %v1615
        %v2249 = vpop.f32.mrf.mxu0
        %v2250 = vadd.f32 %v2201, %v2249
        %v2251 = vpop.f32.mrf.mxu0
        %v2252 = vadd.f32 %v2203, %v2251
        %2253 = vmatmul.bf16.gmra.mxu0 %v1623
        %v2254 = vpop.f32.mrf.mxu0
        %v2255 = vadd.f32 %v2206, %v2254
        %v2256 = vpop.f32.mrf.mxu0
        %v2257 = vadd.f32 %v2208, %v2256
        %2258 = vmatmul.bf16.gmra.mxu0 %v1631
        %v2259 = vpop.f32.mrf.mxu0
        %v2260 = vadd.f32 %v2211, %v2259
        %v2261 = vpop.f32.mrf.mxu0
        %v2262 = vadd.f32 %v2213, %v2261
        %2263 = vmatmul.bf16.gmra.mxu0 %v1639
        %v2264 = vpop.f32.mrf.mxu0
        %v2265 = vadd.f32 %v2216, %v2264
        %v2266 = vpop.f32.mrf.mxu0
        %v2267 = vadd.f32 %v2218, %v2266
        %2268 = vmatmul.bf16.gmra.mxu0 %v1647
        %v2269 = vpop.f32.mrf.mxu0
        %v2270 = vadd.f32 %v2221, %v2269
        %v2271 = vpop.f32.mrf.mxu0
        %v2272 = vadd.f32 %v2223, %v2271
        %2273 = vmatmul.bf16.gmra.mxu0 %v1655
        %v2274 = vpop.f32.mrf.mxu0
        %v2275 = vadd.f32 %v2226, %v2274
        %v2276 = vpop.f32.mrf.mxu0
        %v2277 = vadd.f32 %v2228, %v2276
        %2278 = vmatmul.bf16.gmra.mxu0 %v1663
        %v2279 = vpop.f32.mrf.mxu0
        %v2280 = vadd.f32 %v2231, %v2279
        %v2281 = vpop.f32.mrf.mxu0
        %v2282 = vadd.f32 %v2233, %v2281
        %2283 = vdwg.mxu0
        %2284 = vmatpush.bf16.msra.mxu0 %v2081
        %2285 = vmatpush.bf16.msra.mxu0 %v2080
        %2286 = vmatpush.bf16.msra.mxu0 %v2079
        %2287 = vmatpush.bf16.msra.mxu0 %v2078
        %2288 = vmatpush.bf16.msra.mxu0 %v2077
        %2289 = vmatpush.bf16.msra.mxu0 %v2076
        %2290 = vmatpush.bf16.msra.mxu0 %v2075
        %2291 = vmatpush.bf16.msra.mxu0 %v2074
        %2292 = vmatmul.bf16.gmra.mxu0 %v1608
        %v2293 = vpop.f32.mrf.mxu0
        %v2294 = vadd.f32 %v2245, %v2293
        %v2295 = vpop.f32.mrf.mxu0
        %v2296 = vadd.f32 %v2247, %v2295
        %2297 = vmatmul.bf16.gmra.mxu0 %v1616
        %v2298 = vpop.f32.mrf.mxu0
        %v2299 = vadd.f32 %v2250, %v2298
        %v2300 = vpop.f32.mrf.mxu0
        %v2301 = vadd.f32 %v2252, %v2300
        %2302 = vmatmul.bf16.gmra.mxu0 %v1624
        %v2303 = vpop.f32.mrf.mxu0
        %v2304 = vadd.f32 %v2255, %v2303
        %v2305 = vpop.f32.mrf.mxu0
        %v2306 = vadd.f32 %v2257, %v2305
        %2307 = vmatmul.bf16.gmra.mxu0 %v1632
        %v2308 = vpop.f32.mrf.mxu0
        %v2309 = vadd.f32 %v2260, %v2308
        %v2310 = vpop.f32.mrf.mxu0
        %v2311 = vadd.f32 %v2262, %v2310
        %2312 = vmatmul.bf16.gmra.mxu0 %v1640
        %v2313 = vpop.f32.mrf.mxu0
        %v2314 = vadd.f32 %v2265, %v2313
        %v2315 = vpop.f32.mrf.mxu0
        %v2316 = vadd.f32 %v2267, %v2315
        %2317 = vmatmul.bf16.gmra.mxu0 %v1648
        %v2318 = vpop.f32.mrf.mxu0
        %v2319 = vadd.f32 %v2270, %v2318
        %v2320 = vpop.f32.mrf.mxu0
        %v2321 = vadd.f32 %v2272, %v2320
        %2322 = vmatmul.bf16.gmra.mxu0 %v1656
        %v2323 = vpop.f32.mrf.mxu0
        %v2324 = vadd.f32 %v2275, %v2323
        %v2325 = vpop.f32.mrf.mxu0
        %v2326 = vadd.f32 %v2277, %v2325
        %2327 = vmatmul.bf16.gmra.mxu0 %v1664
        %v2328 = vpop.f32.mrf.mxu0
        %v2329 = vadd.f32 %v2280, %v2328
        %v2330 = vpop.f32.mrf.mxu0
        %v2331 = vadd.f32 %v2282, %v2330
        %2332 = vdwg.mxu0
        %2333 = vmatpush.bf16.msra.mxu0 %v2089
        %2334 = vmatpush.bf16.msra.mxu0 %v2088
        %2335 = vmatpush.bf16.msra.mxu0 %v2087
        %2336 = vmatpush.bf16.msra.mxu0 %v2086
        %2337 = vmatpush.bf16.msra.mxu0 %v2085
        %2338 = vmatpush.bf16.msra.mxu0 %v2084
        %2339 = vmatpush.bf16.msra.mxu0 %v2083
        %2340 = vmatpush.bf16.msra.mxu0 %v2082
        %2341 = vmatmul.bf16.gmra.mxu0 %v1609
        %v2342 = vpop.f32.mrf.mxu0
        %v2343 = vadd.f32 %v2294, %v2342
        %v2344 = vpop.f32.mrf.mxu0
        %v2345 = vadd.f32 %v2296, %v2344
        %2346 = vmatmul.bf16.gmra.mxu0 %v1617
        %v2347 = vpop.f32.mrf.mxu0
        %v2348 = vadd.f32 %v2299, %v2347
        %v2349 = vpop.f32.mrf.mxu0
        %v2350 = vadd.f32 %v2301, %v2349
        %2351 = vmatmul.bf16.gmra.mxu0 %v1625
        %v2352 = vpop.f32.mrf.mxu0
        %v2353 = vadd.f32 %v2304, %v2352
        %v2354 = vpop.f32.mrf.mxu0
        %v2355 = vadd.f32 %v2306, %v2354
        %2356 = vmatmul.bf16.gmra.mxu0 %v1633
        %v2357 = vpop.f32.mrf.mxu0
        %v2358 = vadd.f32 %v2309, %v2357
        %v2359 = vpop.f32.mrf.mxu0
        %v2360 = vadd.f32 %v2311, %v2359
        %2361 = vmatmul.bf16.gmra.mxu0 %v1641
        %v2362 = vpop.f32.mrf.mxu0
        %v2363 = vadd.f32 %v2314, %v2362
        %v2364 = vpop.f32.mrf.mxu0
        %v2365 = vadd.f32 %v2316, %v2364
        %2366 = vmatmul.bf16.gmra.mxu0 %v1649
        %v2367 = vpop.f32.mrf.mxu0
        %v2368 = vadd.f32 %v2319, %v2367
        %v2369 = vpop.f32.mrf.mxu0
        %v2370 = vadd.f32 %v2321, %v2369
        %2371 = vmatmul.bf16.gmra.mxu0 %v1657
        %v2372 = vpop.f32.mrf.mxu0
        %v2373 = vadd.f32 %v2324, %v2372
        %v2374 = vpop.f32.mrf.mxu0
        %v2375 = vadd.f32 %v2326, %v2374
        %2376 = vmatmul.bf16.gmra.mxu0 %v1665
        %v2377 = vpop.f32.mrf.mxu0
        %v2378 = vadd.f32 %v2329, %v2377
        %v2379 = vpop.f32.mrf.mxu0
        %v2380 = vadd.f32 %v2331, %v2379
        %2381 = vdwg.mxu0
        %2382 = vmatpush.bf16.msra.mxu0 %v2097
        %2383 = vmatpush.bf16.msra.mxu0 %v2096
        %2384 = vmatpush.bf16.msra.mxu0 %v2095
        %2385 = vmatpush.bf16.msra.mxu0 %v2094
        %2386 = vmatpush.bf16.msra.mxu0 %v2093
        %2387 = vmatpush.bf16.msra.mxu0 %v2092
        %2388 = vmatpush.bf16.msra.mxu0 %v2091
        %2389 = vmatpush.bf16.msra.mxu0 %v2090
        %2390 = vmatmul.bf16.gmra.mxu0 %v1610
        %v2391 = vpop.f32.mrf.mxu0
        %v2392 = vadd.f32 %v2343, %v2391
        %v2393 = vpop.f32.mrf.mxu0
        %v2394 = vadd.f32 %v2345, %v2393
        %2395 = vmatmul.bf16.gmra.mxu0 %v1618
        %v2396 = vpop.f32.mrf.mxu0
        %v2397 = vadd.f32 %v2348, %v2396
        %v2398 = vpop.f32.mrf.mxu0
        %v2399 = vadd.f32 %v2350, %v2398
        %2400 = vmatmul.bf16.gmra.mxu0 %v1626
        %v2401 = vpop.f32.mrf.mxu0
        %v2402 = vadd.f32 %v2353, %v2401
        %v2403 = vpop.f32.mrf.mxu0
        %v2404 = vadd.f32 %v2355, %v2403
        %2405 = vmatmul.bf16.gmra.mxu0 %v1634
        %v2406 = vpop.f32.mrf.mxu0
        %v2407 = vadd.f32 %v2358, %v2406
        %v2408 = vpop.f32.mrf.mxu0
        %v2409 = vadd.f32 %v2360, %v2408
        %2410 = vmatmul.bf16.gmra.mxu0 %v1642
        %v2411 = vpop.f32.mrf.mxu0
        %v2412 = vadd.f32 %v2363, %v2411
        %v2413 = vpop.f32.mrf.mxu0
        %v2414 = vadd.f32 %v2365, %v2413
        %2415 = vmatmul.bf16.gmra.mxu0 %v1650
        %v2416 = vpop.f32.mrf.mxu0
        %v2417 = vadd.f32 %v2368, %v2416
        %v2418 = vpop.f32.mrf.mxu0
        %v2419 = vadd.f32 %v2370, %v2418
        %2420 = vmatmul.bf16.gmra.mxu0 %v1658
        %v2421 = vpop.f32.mrf.mxu0
        %v2422 = vadd.f32 %v2373, %v2421
        %v2423 = vpop.f32.mrf.mxu0
        %v2424 = vadd.f32 %v2375, %v2423
        %2425 = vmatmul.bf16.gmra.mxu0 %v1666
        %v2426 = vpop.f32.mrf.mxu0
        %v2427 = vadd.f32 %v2378, %v2426
        %v2428 = vpop.f32.mrf.mxu0
        %v2429 = vadd.f32 %v2380, %v2428
        %2430 = vdwg.mxu0
        %2431 = vmatpush.bf16.msra.mxu0 %v2105
        %2432 = vmatpush.bf16.msra.mxu0 %v2104
        %2433 = vmatpush.bf16.msra.mxu0 %v2103
        %2434 = vmatpush.bf16.msra.mxu0 %v2102
        %2435 = vmatpush.bf16.msra.mxu0 %v2101
        %2436 = vmatpush.bf16.msra.mxu0 %v2100
        %2437 = vmatpush.bf16.msra.mxu0 %v2099
        %2438 = vmatpush.bf16.msra.mxu0 %v2098
        %2439 = vmatmul.bf16.gmra.mxu0 %v1611
        %v2440 = vpop.f32.mrf.mxu0
        %v2441 = vadd.f32 %v2392, %v2440
        %v2442 = vpop.f32.mrf.mxu0
        %v2443 = vadd.f32 %v2394, %v2442
        %2444 = vmatmul.bf16.gmra.mxu0 %v1619
        %v2445 = vpop.f32.mrf.mxu0
        %v2446 = vadd.f32 %v2397, %v2445
        %v2447 = vpop.f32.mrf.mxu0
        %v2448 = vadd.f32 %v2399, %v2447
        %2449 = vmatmul.bf16.gmra.mxu0 %v1627
        %v2450 = vpop.f32.mrf.mxu0
        %v2451 = vadd.f32 %v2402, %v2450
        %v2452 = vpop.f32.mrf.mxu0
        %v2453 = vadd.f32 %v2404, %v2452
        %2454 = vmatmul.bf16.gmra.mxu0 %v1635
        %v2455 = vpop.f32.mrf.mxu0
        %v2456 = vadd.f32 %v2407, %v2455
        %v2457 = vpop.f32.mrf.mxu0
        %v2458 = vadd.f32 %v2409, %v2457
        %2459 = vmatmul.bf16.gmra.mxu0 %v1643
        %v2460 = vpop.f32.mrf.mxu0
        %v2461 = vadd.f32 %v2412, %v2460
        %v2462 = vpop.f32.mrf.mxu0
        %v2463 = vadd.f32 %v2414, %v2462
        %2464 = vmatmul.bf16.gmra.mxu0 %v1651
        %v2465 = vpop.f32.mrf.mxu0
        %v2466 = vadd.f32 %v2417, %v2465
        %v2467 = vpop.f32.mrf.mxu0
        %v2468 = vadd.f32 %v2419, %v2467
        %2469 = vmatmul.bf16.gmra.mxu0 %v1659
        %v2470 = vpop.f32.mrf.mxu0
        %v2471 = vadd.f32 %v2422, %v2470
        %v2472 = vpop.f32.mrf.mxu0
        %v2473 = vadd.f32 %v2424, %v2472
        %2474 = vmatmul.bf16.gmra.mxu0 %v1667
        %v2475 = vpop.f32.mrf.mxu0
        %v2476 = vadd.f32 %v2427, %v2475
        %v2477 = vpop.f32.mrf.mxu0
        %v2478 = vadd.f32 %v2429, %v2477
        %2479 = vdwg.mxu0
        %2480 = vmatpush.bf16.msra.mxu0 %v2113
        %2481 = vmatpush.bf16.msra.mxu0 %v2112
        %2482 = vmatpush.bf16.msra.mxu0 %v2111
        %2483 = vmatpush.bf16.msra.mxu0 %v2110
        %2484 = vmatpush.bf16.msra.mxu0 %v2109
        %2485 = vmatpush.bf16.msra.mxu0 %v2108
        %2486 = vmatpush.bf16.msra.mxu0 %v2107
        %2487 = vmatpush.bf16.msra.mxu0 %v2106
        %2488 = vmatmul.bf16.gmra.mxu0 %v1612
        %v2489 = vpop.f32.mrf.mxu0
        %v2490 = vadd.f32 %v2441, %v2489
        %v2491 = vpop.f32.mrf.mxu0
        %v2492 = vadd.f32 %v2443, %v2491
        %2493 = vmatmul.bf16.gmra.mxu0 %v1620
        %v2494 = vpop.f32.mrf.mxu0
        %v2495 = vadd.f32 %v2446, %v2494
        %v2496 = vpop.f32.mrf.mxu0
        %v2497 = vadd.f32 %v2448, %v2496
        %2498 = vmatmul.bf16.gmra.mxu0 %v1628
        %v2499 = vpop.f32.mrf.mxu0
        %v2500 = vadd.f32 %v2451, %v2499
        %v2501 = vpop.f32.mrf.mxu0
        %v2502 = vadd.f32 %v2453, %v2501
        %2503 = vmatmul.bf16.gmra.mxu0 %v1636
        %v2504 = vpop.f32.mrf.mxu0
        %v2505 = vadd.f32 %v2456, %v2504
        %v2506 = vpop.f32.mrf.mxu0
        %v2507 = vadd.f32 %v2458, %v2506
        %2508 = vmatmul.bf16.gmra.mxu0 %v1644
        %v2509 = vpop.f32.mrf.mxu0
        %v2510 = vadd.f32 %v2461, %v2509
        %v2511 = vpop.f32.mrf.mxu0
        %v2512 = vadd.f32 %v2463, %v2511
        %2513 = vmatmul.bf16.gmra.mxu0 %v1652
        %v2514 = vpop.f32.mrf.mxu0
        %v2515 = vadd.f32 %v2466, %v2514
        %v2516 = vpop.f32.mrf.mxu0
        %v2517 = vadd.f32 %v2468, %v2516
        %2518 = vmatmul.bf16.gmra.mxu0 %v1660
        %v2519 = vpop.f32.mrf.mxu0
        %v2520 = vadd.f32 %v2471, %v2519
        %v2521 = vpop.f32.mrf.mxu0
        %v2522 = vadd.f32 %v2473, %v2521
        %2523 = vmatmul.bf16.gmra.mxu0 %v1668
        %v2524 = vpop.f32.mrf.mxu0
        %v2525 = vadd.f32 %v2476, %v2524
        %v2526 = vpop.f32.mrf.mxu0
        %v2527 = vadd.f32 %v2478, %v2526
        %2528 = vdwg.mxu0
        %2529 = vmatpush.bf16.msra.mxu0 %v2121
        %2530 = vmatpush.bf16.msra.mxu0 %v2120
        %2531 = vmatpush.bf16.msra.mxu0 %v2119
        %2532 = vmatpush.bf16.msra.mxu0 %v2118
        %2533 = vmatpush.bf16.msra.mxu0 %v2117
        %2534 = vmatpush.bf16.msra.mxu0 %v2116
        %2535 = vmatpush.bf16.msra.mxu0 %v2115
        %2536 = vmatpush.bf16.msra.mxu0 %v2114
        %2537 = vmatmul.bf16.gmra.mxu0 %v1613
        %v2538 = vpop.f32.mrf.mxu0
        %v2539 = vadd.f32 %v2490, %v2538
        %v2540 = vpop.f32.mrf.mxu0
        %v2541 = vadd.f32 %v2492, %v2540
        %2542 = vmatmul.bf16.gmra.mxu0 %v1621
        %v2543 = vpop.f32.mrf.mxu0
        %v2544 = vadd.f32 %v2495, %v2543
        %v2545 = vpop.f32.mrf.mxu0
        %v2546 = vadd.f32 %v2497, %v2545
        %2547 = vmatmul.bf16.gmra.mxu0 %v1629
        %v2548 = vpop.f32.mrf.mxu0
        %v2549 = vadd.f32 %v2500, %v2548
        %v2550 = vpop.f32.mrf.mxu0
        %v2551 = vadd.f32 %v2502, %v2550
        %2552 = vmatmul.bf16.gmra.mxu0 %v1637
        %v2553 = vpop.f32.mrf.mxu0
        %v2554 = vadd.f32 %v2505, %v2553
        %v2555 = vpop.f32.mrf.mxu0
        %v2556 = vadd.f32 %v2507, %v2555
        %2557 = vmatmul.bf16.gmra.mxu0 %v1645
        %v2558 = vpop.f32.mrf.mxu0
        %v2559 = vadd.f32 %v2510, %v2558
        %v2560 = vpop.f32.mrf.mxu0
        %v2561 = vadd.f32 %v2512, %v2560
        %2562 = vmatmul.bf16.gmra.mxu0 %v1653
        %v2563 = vpop.f32.mrf.mxu0
        %v2564 = vadd.f32 %v2515, %v2563
        %v2565 = vpop.f32.mrf.mxu0
        %v2566 = vadd.f32 %v2517, %v2565
        %2567 = vmatmul.bf16.gmra.mxu0 %v1661
        %v2568 = vpop.f32.mrf.mxu0
        %v2569 = vadd.f32 %v2520, %v2568
        %v2570 = vpop.f32.mrf.mxu0
        %v2571 = vadd.f32 %v2522, %v2570
        %2572 = vmatmul.bf16.gmra.mxu0 %v1669
        %v2573 = vpop.f32.mrf.mxu0
        %v2574 = vadd.f32 %v2525, %v2573
        %v2575 = vpop.f32.mrf.mxu0
        %v2576 = vadd.f32 %v2527, %v2575
        %2577 = vdwg.mxu0
        %vm2578 = vcmp.gt.f32.partialorder %v2539, 0.0
        %vm2579 = vcmp.gt.f32.partialorder %v2541, 0.0
        %vm2580 = vcmp.gt.f32.partialorder %v2544, 0.0
        %vm2581 = vcmp.gt.f32.partialorder %v2546, 0.0
        %vm2582 = vcmp.gt.f32.partialorder %v2549, 0.0
        %vm2583 = vcmp.gt.f32.partialorder %v2551, 0.0
        %vm2584 = vcmp.gt.f32.partialorder %v2554, 0.0
        %vm2585 = vcmp.gt.f32.partialorder %v2556, 0.0
        %vm2586 = vcmp.gt.f32.partialorder %v2559, 0.0
        %vm2587 = vcmp.gt.f32.partialorder %v2561, 0.0
        %vm2588 = vcmp.gt.f32.partialorder %v2564, 0.0
        %vm2589 = vcmp.gt.f32.partialorder %v2566, 0.0
        %vm2590 = vcmp.gt.f32.partialorder %v2569, 0.0
        %vm2591 = vcmp.gt.f32.partialorder %v2571, 0.0
        %vm2592 = vcmp.gt.f32.partialorder %v2574, 0.0
        %vm2593 = vcmp.gt.f32.partialorder %v2576, 0.0
        %v2594 = vmul.f32 %v2539, 0.01
        %v2595 = vmul.f32 %v2541, 0.01
        %v2596 = vmul.f32 %v2544, 0.01
        %v2597 = vmul.f32 %v2546, 0.01
        %v2598 = vmul.f32 %v2549, 0.01
        %v2599 = vmul.f32 %v2551, 0.01
        %v2600 = vmul.f32 %v2554, 0.01
        %v2601 = vmul.f32 %v2556, 0.01
        %v2602 = vmul.f32 %v2559, 0.01
        %v2603 = vmul.f32 %v2561, 0.01
        %v2604 = vmul.f32 %v2564, 0.01
        %v2605 = vmul.f32 %v2566, 0.01
        %v2606 = vmul.f32 %v2569, 0.01
        %v2607 = vmul.f32 %v2571, 0.01
        %v2608 = vmul.f32 %v2574, 0.01
        %v2609 = vmul.f32 %v2576, 0.01
        %v2610 = vsel %vm2578, %v2539, %v2594
        %v2611 = vsel %vm2579, %v2541, %v2595
        %v2612 = vsel %vm2580, %v2544, %v2596
        %v2613 = vsel %vm2581, %v2546, %v2597
        %v2614 = vsel %vm2582, %v2549, %v2598
        %v2615 = vsel %vm2583, %v2551, %v2599
        %v2616 = vsel %vm2584, %v2554, %v2600
        %v2617 = vsel %vm2585, %v2556, %v2601
        %v2618 = vsel %vm2586, %v2559, %v2602
        %v2619 = vsel %vm2587, %v2561, %v2603
        %v2620 = vsel %vm2588, %v2564, %v2604
        %v2621 = vsel %vm2589, %v2566, %v2605
        %v2622 = vsel %vm2590, %v2569, %v2606
        %v2623 = vsel %vm2591, %v2571, %v2607
        %v2624 = vsel %vm2592, %v2574, %v2608
        %v2625 = vsel %vm2593, %v2576, %v2609
        %v2626 = vld [vmem:[%s301] sm:$0xf]
        %v2627 = vld [vmem:[%s301 + $0x4] sm:$0xf]
        %v2628 = vld [vmem:[%s301 + $0x8] sm:$0xf]
        %v2629 = vld [vmem:[%s301 + $0xc] sm:$0xf]
        %v2630 = vld [vmem:[%s301 + $0x10] sm:$0xf]
        %v2631 = vld [vmem:[%s301 + $0x14] sm:$0xf]
        %v2632 = vld [vmem:[%s301 + $0x18] sm:$0xf]
        %v2633 = vld [vmem:[%s301 + $0x1c] sm:$0xf]
        %v2634 = vld [vmem:[%s301 + $0x20] sm:$0xf]
        %v2635 = vld [vmem:[%s301 + $0x24] sm:$0xf]
        %v2636 = vld [vmem:[%s301 + $0x28] sm:$0xf]
        %v2637 = vld [vmem:[%s301 + $0x2c] sm:$0xf]
        %v2638 = vld [vmem:[%s301 + $0x30] sm:$0xf]
        %v2639 = vld [vmem:[%s301 + $0x34] sm:$0xf]
        %v2640 = vld [vmem:[%s301 + $0x38] sm:$0xf]
        %v2641 = vld [vmem:[%s301 + $0x3c] sm:$0xf]
        %v2642 = vunpack.c.l.bf16 %v2626
        %v2643 = vunpack.c.l.bf16 %v2627
        %v2644 = vunpack.c.l.bf16 %v2628
        %v2645 = vunpack.c.l.bf16 %v2629
        %v2646 = vunpack.c.l.bf16 %v2630
        %v2647 = vunpack.c.l.bf16 %v2631
        %v2648 = vunpack.c.l.bf16 %v2632
        %v2649 = vunpack.c.l.bf16 %v2633
        %v2650 = vunpack.c.l.bf16 %v2634
        %v2651 = vunpack.c.l.bf16 %v2635
        %v2652 = vunpack.c.l.bf16 %v2636
        %v2653 = vunpack.c.l.bf16 %v2637
        %v2654 = vunpack.c.l.bf16 %v2638
        %v2655 = vunpack.c.l.bf16 %v2639
        %v2656 = vunpack.c.l.bf16 %v2640
        %v2657 = vunpack.c.l.bf16 %v2641
        %v2658 = vadd.f32 %v2642, %v2610
        %v2659 = vadd.f32 %v2643, %v2611
        %v2660 = vadd.f32 %v2644, %v2612
        %v2661 = vadd.f32 %v2645, %v2613
        %v2662 = vadd.f32 %v2646, %v2614
        %v2663 = vadd.f32 %v2647, %v2615
        %v2664 = vadd.f32 %v2648, %v2616
        %v2665 = vadd.f32 %v2649, %v2617
        %v2666 = vadd.f32 %v2650, %v2618
        %v2667 = vadd.f32 %v2651, %v2619
        %v2668 = vadd.f32 %v2652, %v2620
        %v2669 = vadd.f32 %v2653, %v2621
        %v2670 = vadd.f32 %v2654, %v2622
        %v2671 = vadd.f32 %v2655, %v2623
        %v2672 = vadd.f32 %v2656, %v2624
        %v2673 = vadd.f32 %v2657, %v2625
        %v2674 = vpack.c.bf16 %v2658, %v2658
        %v2675 = vpack.c.bf16 %v2659, %v2659
        %v2676 = vpack.c.bf16 %v2660, %v2660
        %v2677 = vpack.c.bf16 %v2661, %v2661
        %v2678 = vpack.c.bf16 %v2662, %v2662
        %v2679 = vpack.c.bf16 %v2663, %v2663
        %v2680 = vpack.c.bf16 %v2664, %v2664
        %v2681 = vpack.c.bf16 %v2665, %v2665
        %v2682 = vpack.c.bf16 %v2666, %v2666
        %v2683 = vpack.c.bf16 %v2667, %v2667
        %v2684 = vpack.c.bf16 %v2668, %v2668
        %v2685 = vpack.c.bf16 %v2669, %v2669
        %v2686 = vpack.c.bf16 %v2670, %v2670
        %v2687 = vpack.c.bf16 %v2671, %v2671
        %v2688 = vpack.c.bf16 %v2672, %v2672
        %v2689 = vpack.c.bf16 %v2673, %v2673
        %2690 = vst [vmem:[%s360] sm:$0xf] %v2674
        %2691 = vst [vmem:[%s360 + $0x4] sm:$0xf] %v2675
        %2692 = vst [vmem:[%s360 + $0x8] sm:$0xf] %v2676
        %2693 = vst [vmem:[%s360 + $0xc] sm:$0xf] %v2677
        %2694 = vst [vmem:[%s360 + $0x10] sm:$0xf] %v2678
        %2695 = vst [vmem:[%s360 + $0x14] sm:$0xf] %v2679
        %2696 = vst [vmem:[%s360 + $0x18] sm:$0xf] %v2680
        %2697 = vst [vmem:[%s360 + $0x1c] sm:$0xf] %v2681
        %2698 = vst [vmem:[%s360 + $0x20] sm:$0xf] %v2682
        %2699 = vst [vmem:[%s360 + $0x24] sm:$0xf] %v2683
        %2700 = vst [vmem:[%s360 + $0x28] sm:$0xf] %v2684
        %2701 = vst [vmem:[%s360 + $0x2c] sm:$0xf] %v2685
        %2702 = vst [vmem:[%s360 + $0x30] sm:$0xf] %v2686
        %2703 = vst [vmem:[%s360 + $0x34] sm:$0xf] %v2687
        %2704 = vst [vmem:[%s360 + $0x38] sm:$0xf] %v2688
        %2705 = vst [vmem:[%s360 + $0x3c] sm:$0xf] %v2689
        %s2706 = sand.u32 %s171, 1
        %s2707 = scalar_lea.sflag [#allocation4], %s2706
        %s2708 = sand.u32 %s171, 1
        %s2709 = smul.addr %s2708, 64
        %s2710 = scalar_lea.vmem [#allocation11], %s2709
        // Predicated region
        $region65: #{tpu_custom_call.1} parent=43 // pred_check
          %p2711 = pneg %p181
        $region66: #{tpu_custom_call.1} parent=43 // pred_check_branch
          %2713 = sbr.rel (%p2711) target = $region68
        $region67: #{tpu_custom_call.1} parent=43 // pred_region
          %s2714 = smul.u32 16, %s27
          %2716 = vsyncadd %s2707, 0
          %s2717 = smul.addr %s2714, 4
          %s2718 = scalar_lea.hbm %s6, %s2717
          %s2719 = sshll.u32 %s2710, 4
          %s2720 = int_to_ptr.vmem [resolvable:$true] %s2719
          %s2721 = sshll.u32 %s2718, 4
          %s2722 = int_to_ptr.hbm [resolvable:$true] %s2721
          %2727 = dma.vmem_to_hbm [thread:$0]  %s2720, 1024, %s2722, %s2707, 64, 64, 4
        $region68: #{tpu_custom_call.1} parent=43 // pred_fallthru
          _
      $region44: #{tpu_custom_call.1} parent=5 // pred_fallthru
        _
      %p2728 = scmp.le.s32.totalorder 2, %s22
      // Predicated region
      $region69: #{tpu_custom_call.1} parent=5 // pred_check
        %p2729 = pneg %p2728
      $region70: #{tpu_custom_call.1} parent=5 // pred_check_branch
        %2731 = sbr.rel (%p2729) target = $region72
      $region71: #{tpu_custom_call.1} parent=5 // pred_region
        %s2732 = ssub.s32 %s22, 2
        // Predicated region
        $region73: #{tpu_custom_call.1} parent=71 // pred_check
          %p2733 = pneg %p187
        $region74: #{tpu_custom_call.1} parent=71 // pred_check_branch
          %2735 = sbr.rel (%p2733) target = $region76
        $region75: #{tpu_custom_call.1} parent=71 // pred_region
          %s2736 = sand.u32 %s172, 1
          %s2737 = scalar_lea.sflag [#allocation4], %s2736
          %s2738 = sand.u32 %s172, 1
          %s2739 = smul.addr %s2738, 64
          %s2740 = scalar_lea.vmem [#allocation11], %s2739
          %2742 = dma.done %s2737, 1024
        $region76: #{tpu_custom_call.1} parent=71 // pred_fallthru
          _
      $region72: #{tpu_custom_call.1} parent=5 // pred_fallthru
        _
    $region6: #{tpu_custom_call.1} parent=1 // loop_footer
      %s26 = sadd.s32 1, %s22
    $region7: #{tpu_custom_call.1} parent=1 // loop_footer_branch
      %21 = sbr.rel target = $region3
    $region8: #{tpu_custom_call.1} parent=1 // loop_exit
      _
    %2743 = vsyncpa [#allocation3], 1
    %s2744 = scalar_lea.sflag [#allocation3], 1
    %2745 = vsyncpa %s2744, 1
    %2746 = vsyncpa [#allocation6], 1
    %s2747 = scalar_lea.sflag [#allocation6], 1
    %2748 = vsyncpa %s2747, 1
    %2749 = vsyncpa [#allocation9], 1
    %2750 = vsyncpa [#allocation4], 1
    %s2751 = scalar_lea.sflag [#allocation4], 1
    %2752 = vsyncpa %s2751, 1

</llo_original>
